<compile_context>
chip_gen: v5e
topology: v5e:2x2
jax: 0.10.0
libtpu: 0.0.40
codegen_flags: <defaults>
</compile_context>

<pallas_src>
import functools

import jax
import jax.numpy as jnp
import numpy as np
from jax import lax
from jax.experimental import pallas as pl
from jax.experimental.pallas import tpu as pltpu


# -----------------------------------------------------------------------------
# Fused kernel: one image per grid step.
#   x_ref  : (1, H*W, Cin)   f32   per-image activations (NHWC flattened)
#   s1,b1  : (1, Cin)        f32   folded BN of LearnedGroupConv
#   w1_ref : (Cin, Cb)       bf16  (weight * condensation-mask), transposed
#   s2,b2  : (1, Cb)         f32   folded BatchNorm2d
#   w2_ref : (3, 3*Cb, Cout) bf16  grouped 3x3 weight as block-diagonal per-ky
#                                  matrices with kx folded into the K axis
#   o_ref  : (1, H*W, Cout)  f32
#   ypad_ref: (H+2, W+2, Cb) f32   VMEM scratch holding the zero-padded
#                                  bottleneck output (never touches HBM)
# -----------------------------------------------------------------------------
def dense_layer_kernel(x_ref, s1_ref, b1_ref, w1_ref, s2_ref, b2_ref, w2_ref,
                       o_ref, ypad_ref, *, H, W):
    Cb = w1_ref.shape[1]
    Cout = w2_ref.shape[2]
    HW = H * W

    # ---- LearnedGroupConv path: BN -> ReLU -> (masked) 1x1 conv --------------
    x = x_ref[0, :, :]                                        # (H*W, Cin)  f32
    h = jnp.maximum(x * s1_ref[...] + b1_ref[...], 0.0)       # BN1 + ReLU (f32 VPU)
    y = jnp.dot(h.astype(jnp.bfloat16), w1_ref[...],          # 1x1 conv == matmul (MXU)
                preferred_element_type=jnp.float32)           # (H*W, Cb)   f32
    # ---- BatchNorm2d + ReLU ---------------------------------------------------
    y = jnp.maximum(y * s2_ref[...] + b2_ref[...], 0.0)

    # ---- zero-padded intermediate lives only in VMEM (no HBM round trip) ------
    ypad_ref[...] = jnp.zeros_like(ypad_ref)
    ypad_ref[1:H + 1, 1:W + 1, :] = y.reshape(H, W, Cb)

    # ---- grouped 3x3 conv: fold kx into the lane/channel axis, 3 MXU matmuls --
    yp = ypad_ref[...]                                         # (H+2, W+2, Cb)
    b = jnp.concatenate(
        [yp[:, 0:W, :], yp[:, 1:W + 1, :], yp[:, 2:W + 2, :]],
        axis=-1).astype(jnp.bfloat16)                          # (H+2, W, 3*Cb)
    w2 = w2_ref[...]                                           # (3, 3*Cb, Cout) bf16
    acc = jnp.zeros((HW, Cout), jnp.float32)
    for ky in range(3):                                        # ky: free leading-axis slices
        acc = acc + jnp.dot(b[ky:ky + H].reshape(HW, 3 * Cb), w2[ky],
                            preferred_element_type=jnp.float32)
    o_ref[0, :, :] = acc.astype(o_ref.dtype)


# -----------------------------------------------------------------------------
# Wrapper: layout transforms + pallas_call + final channel concat (torch.cat).
# -----------------------------------------------------------------------------
def dense_layer_forward(x_nchw, params):
    N, Cin, H, W = x_nchw.shape
    w1 = params["w1"]                     # (Cin, Cb)        bf16
    s1, b1 = params["s1"], params["b1"]   # (Cin,)           f32
    s2, b2 = params["s2"], params["b2"]   # (Cb,)            f32
    w2 = params["w2cat"]                  # (3, 3*Cb, Cout)  bf16
    Cb = w1.shape[1]
    Cout = w2.shape[-1]
    HW = H * W

    # NCHW -> NHWC -> (N, H*W, Cin)
    x_flat = jnp.transpose(x_nchw, (0, 2, 3, 1)).reshape(N, HW, Cin)

    # Advisory cost for XLA scheduling around the custom call.
    flops = 2 * N * HW * Cb * (Cin + 9 * Cout)
    bytes_accessed = (N * HW * (Cin + Cout) * 4
                      + (Cin * Cb + 9 * Cb * Cout) * 2
                      + 2 * (Cin + Cb) * 4)
    cost = pl.CostEstimate(flops=flops, transcendentals=0,
                           bytes_accessed=bytes_accessed)

    # Explicit VMEM budget with headroom (safe across v5e/v6e/v7x: <= 48 MiB).
    per_step_vmem = (
        2 * HW * (Cin + Cout) * 4                 # double-buffered in/out blocks
        + (Cin * Cb + 9 * Cb * Cout) * 2          # resident bf16 weights
        + (H + 2) * (W + 2) * Cb * 4              # padded VMEM scratch
        + (H + 2) * W * 3 * Cb * 6                # lane-concat temp (f32 + bf16)
        + 6 * HW * Cb * 4)                        # misc f32 temporaries
    vmem_limit = int(min(48 * 1024 * 1024,
                         max(16 * 1024 * 1024, 4 * per_step_vmem)))

    out_flat = pl.pallas_call(
        functools.partial(dense_layer_kernel, H=H, W=W),
        out_shape=jax.ShapeDtypeStruct((N, HW, Cout), jnp.float32),
        grid=(N,),
        in_specs=[
            pl.BlockSpec((1, HW, Cin), lambda n: (n, 0, 0)),      # per-image block
            pl.BlockSpec((1, Cin), lambda n: (0, 0)),             # resident BN1 scale
            pl.BlockSpec((1, Cin), lambda n: (0, 0)),             # resident BN1 shift
            pl.BlockSpec((Cin, Cb), lambda n: (0, 0)),            # resident 1x1 weight
            pl.BlockSpec((1, Cb), lambda n: (0, 0)),              # resident BN2 scale
            pl.BlockSpec((1, Cb), lambda n: (0, 0)),              # resident BN2 shift
            pl.BlockSpec((3, 3 * Cb, Cout), lambda n: (0, 0, 0)), # resident 3x3 weight
        ],
        out_specs=pl.BlockSpec((1, HW, Cout), lambda n: (n, 0, 0)),
        scratch_shapes=[pltpu.VMEM((H + 2, W + 2, Cb), jnp.float32)],
        compiler_params=pltpu.CompilerParams(
            dimension_semantics=("parallel",),
            vmem_limit_bytes=vmem_limit),
        cost_estimate=cost,
    )(x_flat, s1.reshape(1, Cin), b1.reshape(1, Cin), w1,
      s2.reshape(1, Cb), b2.reshape(1, Cb), w2)

    out_nchw = jnp.transpose(out_flat.reshape(N, H, W, Cout), (0, 3, 1, 2))
    # torch.cat([x, out], dim=1)
    return jnp.concatenate([x_nchw, out_nchw], axis=1)


# -----------------------------------------------------------------------------
# Deterministic parameter construction (shapes from DenseLayer.__init__)
# -----------------------------------------------------------------------------
def make_params(key, in_channels, growth_rate, cfg):
    Cb = cfg["conv_bottleneck"] * growth_rate
    Cout = growth_rate
    G = cfg["group3x3"]
    gci, gco = Cb // G, Cout // G
    eps = 1e-5
    ks = jax.random.split(key, 8)

    # LearnedGroupConv internals: BN(in) -> ReLU -> dropout(eval) -> masked 1x1 conv
    gamma1 = 1.0 + 0.1 * jax.random.normal(ks[0], (in_channels,), jnp.float32)
    beta1 = 0.1 * jax.random.normal(ks[1], (in_channels,), jnp.float32)
    mean1 = 0.1 * jax.random.normal(ks[2], (in_channels,), jnp.float32)
    var1 = jnp.abs(jax.random.normal(ks[3], (in_channels,), jnp.float32)) + 0.5
    s1 = gamma1 / jnp.sqrt(var1 + eps)
    b1 = beta1 - mean1 * s1

    w1_raw = 0.1 * jax.random.normal(ks[4], (Cb, in_channels), jnp.float32)
    mask = jnp.ones((Cb, in_channels), jnp.float32)   # condensation stage 0: all ones
    w1 = (w1_raw * mask).T.astype(jnp.bfloat16)       # (Cin, Cb) bf16 matmul operand

    # batch_norm = nn.BatchNorm2d(Cb), eval mode, folded to scale/shift
    gamma2 = 1.0 + 0.1 * jax.random.normal(ks[5], (Cb,), jnp.float32)
    beta2 = 0.1 * jax.random.normal(ks[6], (Cb,), jnp.float32)
    mean2 = jnp.zeros((Cb,), jnp.float32)
    var2 = jnp.ones((Cb,), jnp.float32)
    s2 = gamma2 / jnp.sqrt(var2 + eps)
    b2 = beta2 - mean2 * s2

    # conv_2: grouped 3x3, PyTorch OIHW weight (Cout, Cb/G, 3, 3)
    w2 = 0.1 * jax.random.normal(ks[7], (Cout, gci, 3, 3), jnp.float32)
    # Block-diagonal per-tap matrices (3, 3, Cb, Cout): grouped conv == block-diag
    # dense matmul.  Fine while Cb/G <= 128.
    # TODO(synk): at real CondenseNet widths (Cb/G > 128), tile over groups
    # instead of materialising structural zeros in the dense weight.
    wbig = np.zeros((3, 3, Cb, Cout), np.float32)
    w2_np = np.asarray(w2)
    for g in range(G):
        for j in range(gco):
            oc = g * gco + j
            wbig[:, :, g * gci:(g + 1) * gci, oc] = np.transpose(w2_np[oc], (1, 2, 0))
    # Fold kx into the K axis: (3, 3, Cb, Cout) -> (3, 3*Cb, Cout) (index kx*Cb + c)
    w2cat = jnp.asarray(wbig.reshape(3, 3 * Cb, Cout)).astype(jnp.bfloat16)

    params = dict(w1=w1, s1=s1, b1=b1, s2=s2, b2=b2, w2cat=w2cat)
    ref_raw = dict(s1=s1, b1=b1, w1_eff=w1_raw * mask, s2=s2, b2=b2, w2=w2, G=G)
    return params, ref_raw


# Pure-JAX reference (sanity check of the fused Pallas kernel)
def reference_forward(x_nchw, ref):
    h = jnp.maximum(x_nchw * ref["s1"][None, :, None, None]
                    + ref["b1"][None, :, None, None], 0.0)
    y = lax.conv_general_dilated(
        h, ref["w1_eff"][:, :, None, None], (1, 1), "VALID",
        dimension_numbers=("NCHW", "OIHW", "NCHW"),
        precision=lax.Precision.HIGHEST)
    y = jnp.maximum(y * ref["s2"][None, :, None, None]
                    + ref["b2"][None, :, None, None], 0.0)
    z = lax.conv_general_dilated(
        y, ref["w2"], (1, 1), ((1, 1), (1, 1)),
        dimension_numbers=("NCHW", "OIHW", "NCHW"),
        feature_group_count=ref["G"],
        precision=lax.Precision.HIGHEST)
    return jnp.concatenate([x_nchw, z], axis=1)


if __name__ == "__main__":
    cfg = dict(conv_bottleneck=4, group1x1=4, group3x3=4,
               condense_factor=4, dropout_rate=0.0)  # eval mode => dropout = identity
    N, Cin, H, W = 2, 8, 16, 16
    growth_rate = 8

    key = jax.random.PRNGKey(0)
    kx, kp = jax.random.split(key)
    x = jax.random.normal(kx, (N, Cin, H, W), jnp.float32)

    params, ref_raw = make_params(kp, Cin, growth_rate, cfg)

    fwd = jax.jit(functools.partial(dense_layer_forward, params=params))
    out = jax.block_until_ready(fwd(x))

    expected_shape = (N, Cin + growth_rate, H, W)
    assert out.shape == expected_shape, (out.shape, expected_shape)

    ref_out = reference_forward(x, ref_raw)
    np.testing.assert_allclose(np.asarray(out), np.asarray(ref_out),
                               rtol=5e-2, atol=5e-2)   # bf16 matmul operands, f32 accum

    print("KERNEL_OK")
</pallas_src>

<mosaic_0001>
module attributes {stable_mosaic.version = 11 : i64} {
  func.func @dense_layer_kernel(%arg0: i32, %arg1: memref<1x256x8xf32, #tpu.memory_space<vmem>>, %arg2: memref<1x8xf32, #tpu.memory_space<vmem>>, %arg3: memref<1x8xf32, #tpu.memory_space<vmem>>, %arg4: memref<8x32xbf16, #tpu.memory_space<vmem>>, %arg5: memref<1x32xf32, #tpu.memory_space<vmem>>, %arg6: memref<1x32xf32, #tpu.memory_space<vmem>>, %arg7: memref<3x96x8xbf16, #tpu.memory_space<vmem>>, %arg8: memref<1x256x8xf32, #tpu.memory_space<vmem>>, %arg9: memref<18x18x32xf32, #tpu.memory_space<vmem>>) attributes {dimension_semantics = [#tpu.dimension_semantics<parallel>], iteration_bounds = array<i64: 2>, scalar_prefetch = 0 : i64, scratch_operands = 1 : i64, tpu.core_type = #tpu.core_type<tc>, window_params = [{transform_indices = @transform_0, window_bounds = array<i64: 1, 256, 8>}, {pipeline_mode = #tpu.pipeline_mode<synchronous>, transform_indices = @transform_1, window_bounds = array<i64: 1, 8>}, {pipeline_mode = #tpu.pipeline_mode<synchronous>, transform_indices = @transform_2, window_bounds = array<i64: 1, 8>}, {pipeline_mode = #tpu.pipeline_mode<synchronous>, transform_indices = @transform_3, window_bounds = array<i64: 8, 32>}, {pipeline_mode = #tpu.pipeline_mode<synchronous>, transform_indices = @transform_4, window_bounds = array<i64: 1, 32>}, {pipeline_mode = #tpu.pipeline_mode<synchronous>, transform_indices = @transform_5, window_bounds = array<i64: 1, 32>}, {pipeline_mode = #tpu.pipeline_mode<synchronous>, transform_indices = @transform_6, window_bounds = array<i64: 3, 96, 8>}, {transform_indices = @transform_7, window_bounds = array<i64: 1, 256, 8>}]} {
    %c0 = arith.constant 0 : index
    %c0_0 = arith.constant 0 : index
    %c0_1 = arith.constant 0 : index
    %0 = vector.load %arg1[%c0, %c0_0, %c0_1] : memref<1x256x8xf32, #tpu.memory_space<vmem>>, vector<1x256x8xf32>
    %1 = vector.shape_cast %0 : vector<1x256x8xf32> to vector<256x8xf32>
    %c0_2 = arith.constant 0 : index
    %c0_3 = arith.constant 0 : index
    %2 = vector.load %arg2[%c0_2, %c0_3] : memref<1x8xf32, #tpu.memory_space<vmem>>, vector<1x8xf32>
    %3 = vector.broadcast %2 : vector<1x8xf32> to vector<256x8xf32>
    %4 = arith.mulf %1, %3 : vector<256x8xf32>
    %c0_4 = arith.constant 0 : index
    %c0_5 = arith.constant 0 : index
    %5 = vector.load %arg3[%c0_4, %c0_5] : memref<1x8xf32, #tpu.memory_space<vmem>>, vector<1x8xf32>
    %6 = vector.broadcast %5 : vector<1x8xf32> to vector<256x8xf32>
    %7 = arith.addf %4, %6 : vector<256x8xf32>
    %cst = arith.constant 0.000000e+00 : f32
    %8 = vector.broadcast %cst : f32 to vector<256x8xf32>
    %9 = arith.maximumf %7, %8 : vector<256x8xf32>
    %10 = arith.truncf %9 : vector<256x8xf32> to vector<256x8xbf16>
    %c0_6 = arith.constant 0 : index
    %c0_7 = arith.constant 0 : index
    %11 = vector.load %arg4[%c0_6, %c0_7] : memref<8x32xbf16, #tpu.memory_space<vmem>>, vector<8x32xbf16>
    %cst_8 = arith.constant dense<0.000000e+00> : vector<256x32xf32>
    %12 = tpu.matmul %10, %11, %cst_8 {dimension_numbers = #tpu.dot_dimension_numbers<[1], [0], [0], [1], [0, 0, 1, 1], [], []>} : vector<256x8xbf16>, vector<8x32xbf16>, vector<256x32xf32> -> vector<256x32xf32>
    %c0_9 = arith.constant 0 : index
    %c0_10 = arith.constant 0 : index
    %13 = vector.load %arg5[%c0_9, %c0_10] : memref<1x32xf32, #tpu.memory_space<vmem>>, vector<1x32xf32>
    %14 = vector.broadcast %13 : vector<1x32xf32> to vector<256x32xf32>
    %15 = arith.mulf %12, %14 : vector<256x32xf32>
    %c0_11 = arith.constant 0 : index
    %c0_12 = arith.constant 0 : index
    %16 = vector.load %arg6[%c0_11, %c0_12] : memref<1x32xf32, #tpu.memory_space<vmem>>, vector<1x32xf32>
    %17 = vector.broadcast %16 : vector<1x32xf32> to vector<256x32xf32>
    %18 = arith.addf %15, %17 : vector<256x32xf32>
    %cst_13 = arith.constant 0.000000e+00 : f32
    %19 = vector.broadcast %cst_13 : f32 to vector<256x32xf32>
    %20 = arith.maximumf %18, %19 : vector<256x32xf32>
    %cst_14 = arith.constant 0.000000e+00 : f32
    %21 = vector.broadcast %cst_14 : f32 to vector<18x18x32xf32>
    %c0_15 = arith.constant 0 : index
    %c0_16 = arith.constant 0 : index
    %c0_17 = arith.constant 0 : index
    %22 = vector.load %arg9[%c0_15, %c0_16, %c0_17] : memref<18x18x32xf32, #tpu.memory_space<vmem>>, vector<18x18x32xf32>
    tpu.vector_store %arg9[%c0_15, %c0_16, %c0_17], %21 {strides = array<i32>} : memref<18x18x32xf32, #tpu.memory_space<vmem>>, vector<18x18x32xf32>,
    %23 = vector.shape_cast %20 : vector<256x32xf32> to vector<16x16x32xf32>
    %c1 = arith.constant 1 : index
    %c1_18 = arith.constant 1 : index
    %c0_19 = arith.constant 0 : index
    %24 = vector.load %arg9[%c1, %c1_18, %c0_19] : memref<18x18x32xf32, #tpu.memory_space<vmem>>, vector<16x16x32xf32>
    tpu.vector_store %arg9[%c1, %c1_18, %c0_19], %23 {strides = array<i32>} : memref<18x18x32xf32, #tpu.memory_space<vmem>>, vector<16x16x32xf32>,
    %c0_20 = arith.constant 0 : index
    %c0_21 = arith.constant 0 : index
    %c0_22 = arith.constant 0 : index
    %25 = vector.load %arg9[%c0_20, %c0_21, %c0_22] : memref<18x18x32xf32, #tpu.memory_space<vmem>>, vector<18x18x32xf32>
    %26 = vector.extract_strided_slice %25 {offsets = [0, 0, 0], sizes = [18, 16, 32], strides = [1, 1, 1]} : vector<18x18x32xf32> to vector<18x16x32xf32>
    %27 = vector.extract_strided_slice %25 {offsets = [0, 1, 0], sizes = [18, 16, 32], strides = [1, 1, 1]} : vector<18x18x32xf32> to vector<18x16x32xf32>
    %28 = vector.extract_strided_slice %25 {offsets = [0, 2, 0], sizes = [18, 16, 32], strides = [1, 1, 1]} : vector<18x18x32xf32> to vector<18x16x32xf32>
    %29 = tpu.concatenate %26, %27, %28 in 2 : vector<18x16x32xf32>, vector<18x16x32xf32>, vector<18x16x32xf32> -> vector<18x16x96xf32>
    %30 = arith.truncf %29 : vector<18x16x96xf32> to vector<18x16x96xbf16>
    %c0_23 = arith.constant 0 : index
    %c0_24 = arith.constant 0 : index
    %c0_25 = arith.constant 0 : index
    %31 = vector.load %arg7[%c0_23, %c0_24, %c0_25] : memref<3x96x8xbf16, #tpu.memory_space<vmem>>, vector<3x96x8xbf16>
    %cst_26 = arith.constant 0.000000e+00 : f32
    %32 = vector.broadcast %cst_26 : f32 to vector<256x8xf32>
    %33 = vector.extract_strided_slice %30 {offsets = [0, 0, 0], sizes = [16, 16, 96], strides = [1, 1, 1]} : vector<18x16x96xbf16> to vector<16x16x96xbf16>
    %34 = vector.shape_cast %33 : vector<16x16x96xbf16> to vector<256x96xbf16>
    %35 = vector.extract_strided_slice %31 {offsets = [0, 0, 0], sizes = [1, 96, 8], strides = [1, 1, 1]} : vector<3x96x8xbf16> to vector<1x96x8xbf16>
    %36 = vector.shape_cast %35 : vector<1x96x8xbf16> to vector<96x8xbf16>
    %cst_27 = arith.constant dense<0.000000e+00> : vector<256x8xf32>
    %37 = tpu.matmul %34, %36, %cst_27 {dimension_numbers = #tpu.dot_dimension_numbers<[1], [0], [0], [1], [0, 0, 1, 1], [], []>} : vector<256x96xbf16>, vector<96x8xbf16>, vector<256x8xf32> -> vector<256x8xf32>
    %38 = arith.addf %32, %37 : vector<256x8xf32>
    %39 = vector.extract_strided_slice %30 {offsets = [1, 0, 0], sizes = [16, 16, 96], strides = [1, 1, 1]} : vector<18x16x96xbf16> to vector<16x16x96xbf16>
    %40 = vector.shape_cast %39 : vector<16x16x96xbf16> to vector<256x96xbf16>
    %41 = vector.extract_strided_slice %31 {offsets = [1, 0, 0], sizes = [1, 96, 8], strides = [1, 1, 1]} : vector<3x96x8xbf16> to vector<1x96x8xbf16>
    %42 = vector.shape_cast %41 : vector<1x96x8xbf16> to vector<96x8xbf16>
    %cst_28 = arith.constant dense<0.000000e+00> : vector<256x8xf32>
    %43 = tpu.matmul %40, %42, %cst_28 {dimension_numbers = #tpu.dot_dimension_numbers<[1], [0], [0], [1], [0, 0, 1, 1], [], []>} : vector<256x96xbf16>, vector<96x8xbf16>, vector<256x8xf32> -> vector<256x8xf32>
    %44 = arith.addf %38, %43 : vector<256x8xf32>
    %45 = vector.extract_strided_slice %30 {offsets = [2, 0, 0], sizes = [16, 16, 96], strides = [1, 1, 1]} : vector<18x16x96xbf16> to vector<16x16x96xbf16>
    %46 = vector.shape_cast %45 : vector<16x16x96xbf16> to vector<256x96xbf16>
    %47 = vector.extract_strided_slice %31 {offsets = [2, 0, 0], sizes = [1, 96, 8], strides = [1, 1, 1]} : vector<3x96x8xbf16> to vector<1x96x8xbf16>
    %48 = vector.shape_cast %47 : vector<1x96x8xbf16> to vector<96x8xbf16>
    %cst_29 = arith.constant dense<0.000000e+00> : vector<256x8xf32>
    %49 = tpu.matmul %46, %48, %cst_29 {dimension_numbers = #tpu.dot_dimension_numbers<[1], [0], [0], [1], [0, 0, 1, 1], [], []>} : vector<256x96xbf16>, vector<96x8xbf16>, vector<256x8xf32> -> vector<256x8xf32>
    %50 = arith.addf %44, %49 : vector<256x8xf32>
    %c0_30 = arith.constant 0 : index
    %c0_31 = arith.constant 0 : index
    %c0_32 = arith.constant 0 : index
    %51 = vector.load %arg8[%c0_30, %c0_31, %c0_32] : memref<1x256x8xf32, #tpu.memory_space<vmem>>, vector<1x256x8xf32>
    %52 = vector.shape_cast %51 : vector<1x256x8xf32> to vector<256x8xf32>
    %53 = vector.shape_cast %50 : vector<256x8xf32> to vector<1x256x8xf32>
    tpu.vector_store %arg8[%c0_30, %c0_31, %c0_32], %53 {strides = array<i32>} : memref<1x256x8xf32, #tpu.memory_space<vmem>>, vector<1x256x8xf32>,
    return
  }
  func.func @transform_0(%arg0: i32) -> (i32, i32, i32) {
    %c0_i32 = arith.constant 0 : i32
    %c0_i32_0 = arith.constant 0 : i32
    %c0_i32_1 = arith.constant 0 : i32
    return %arg0, %c0_i32, %c0_i32_0 : i32, i32, i32
  }
  func.func @transform_1(%arg0: i32) -> (i32, i32) {
    %c0_i32 = arith.constant 0 : i32
    %c0_i32_0 = arith.constant 0 : i32
    %c0_i32_1 = arith.constant 0 : i32
    return %c0_i32, %c0_i32_0 : i32, i32
  }
  func.func @transform_2(%arg0: i32) -> (i32, i32) {
    %c0_i32 = arith.constant 0 : i32
    %c0_i32_0 = arith.constant 0 : i32
    %c0_i32_1 = arith.constant 0 : i32
    return %c0_i32, %c0_i32_0 : i32, i32
  }
  func.func @transform_3(%arg0: i32) -> (i32, i32) {
    %c0_i32 = arith.constant 0 : i32
    %c0_i32_0 = arith.constant 0 : i32
    %c0_i32_1 = arith.constant 0 : i32
    return %c0_i32, %c0_i32_0 : i32, i32
  }
  func.func @transform_4(%arg0: i32) -> (i32, i32) {
    %c0_i32 = arith.constant 0 : i32
    %c0_i32_0 = arith.constant 0 : i32
    %c0_i32_1 = arith.constant 0 : i32
    return %c0_i32, %c0_i32_0 : i32, i32
  }
  func.func @transform_5(%arg0: i32) -> (i32, i32) {
    %c0_i32 = arith.constant 0 : i32
    %c0_i32_0 = arith.constant 0 : i32
    %c0_i32_1 = arith.constant 0 : i32
    return %c0_i32, %c0_i32_0 : i32, i32
  }
  func.func @transform_6(%arg0: i32) -> (i32, i32, i32) {
    %c0_i32 = arith.constant 0 : i32
    %c0_i32_0 = arith.constant 0 : i32
    %c0_i32_1 = arith.constant 0 : i32
    %c0_i32_2 = arith.constant 0 : i32
    return %c0_i32, %c0_i32_0, %c0_i32_1 : i32, i32, i32
  }
  func.func @transform_7(%arg0: i32) -> (i32, i32, i32) {
    %c0_i32 = arith.constant 0 : i32
    %c0_i32_0 = arith.constant 0 : i32
    %c0_i32_1 = arith.constant 0 : i32
    return %arg0, %c0_i32, %c0_i32_0 : i32, i32, i32
  }
}

</mosaic_0001>

<llo_original>
// kernel: dense_layer_forward.1
$region0: #{dense_layer_forward.1}
  #allocation0 [shape = 'u32[]', space=smem, size = 0x4, offset = 0x4, fixed_abs, tag = 'smem constant byte address 0x4 - core index']
  #allocation1 [shape = 'u32[72,128]{1,0:T(1,128)}', space=vmem, size = 0x9000, scoped, tag = 'internal scratch']
  #allocation2 [shape = 'f32[18,18,32]{2,1,0:T(8,128)}', space=vmem, size = 0x36000, scoped, tag = 'scratch operand']
  %s0 = inlined_call_operand.vmem [shape: f32[2,256,8], index: 0, kind: input, shape index: {}]
  %s1 = inlined_call_operand.vmem [shape: f32[1,8], index: 1, kind: input, shape index: {}]
  %s2 = inlined_call_operand.vmem [shape: f32[1,8], index: 2, kind: input, shape index: {}]
  %s3 = inlined_call_operand.vmem [shape: bf16[8,32], index: 3, kind: input, shape index: {}]
  %s4 = inlined_call_operand.vmem [shape: f32[1,32], index: 4, kind: input, shape index: {}]
  %s5 = inlined_call_operand.vmem [shape: f32[1,32], index: 5, kind: input, shape index: {}]
  %s6 = inlined_call_operand.vmem [shape: bf16[3,96,8], index: 6, kind: input, shape index: {}]
  %s7 = inlined_call_operand.vmem [shape: f32[2,256,8], index: 7, kind: output, shape index: {}]
  %s8 = sld [smem:[#allocation0]]
  $region61: #{dense_layer_forward.1} parent=0
    _
  %s10 = ssub.s32 1, %s8
  %s11 = scalar_select 0, %s10, %s8
  loop: start=0, step=1, limit=4
  $region2: #{dense_layer_forward.1} parent=0 // loop_pre_header
    _
  $region3: #{dense_layer_forward.1} parent=0 // loop_header
    %s13 = sphi 0, %s17
    %p14 = scmp.ge.s32.totalorder %s13, 4
    %s23 = sphi 0, %s25
    %s26 = sphi 0, %s23
    %s27 = sphi 0, %s26
    %s43 = sphi 0, %s27
    %s47 = sphi 0, %s47
    %s49 = sphi 0, %s47
    %s50 = sphi 0, %s49
    %s64 = sphi 0, %s50
    %s68 = sphi 0, %s68
    %s70 = sphi 0, %s68
    %s71 = sphi 0, %s70
    %s85 = sphi 0, %s71
    %s89 = sphi 0, %s89
    %s91 = sphi 0, %s89
    %s92 = sphi 0, %s91
    %s106 = sphi 0, %s92
    %s110 = sphi 0, %s110
    %s112 = sphi 0, %s110
    %s113 = sphi 0, %s112
    %s127 = sphi 0, %s113
    %s131 = sphi 0, %s131
    %s133 = sphi 0, %s131
    %s134 = sphi 0, %s133
    %s148 = sphi 0, %s134
    %s152 = sphi 0, %s152
    %s154 = sphi 0, %s152
    %s155 = sphi 0, %s154
    %s169 = sphi 0, %s155
    %s175 = sphi 0, %s177
    %s178 = sphi 0, %s175
    %s179 = sphi 0, %s178
    %s195 = sphi 0, %s179
  $region4: #{dense_layer_forward.1} parent=0 // loop_header_branch
    %16 = sbr.rel (%p14) target = $region8
  $region5: #{dense_layer_forward.1} parent=0 // loop_body
    %s18 = ssub.s32 %s13, 1
    %s19 = ssub.s32 %s13, 2
    %s20 = sadd.s32 %s13, 1
    %s21 = ssub.s32 %s13, %s20
    %p22 = scmp.eq.s32.totalorder %s21, 0
    %s24 = sadd.s32 %s23, 1
    %s25 = scalar_select %p22, %s23, %s24
    %p28 = pneg %p22
    %p29 = scmp.eq.s32.totalorder %s13, 1
    %p30 = por %p28, %p29
    %p31 = scmp.ne.s32.totalorder %s23, %s26
    %p32 = scmp.eq.s32.totalorder %s13, 0
    %p33 = por %p31, %p32
    %p34 = scmp.ne.s32.totalorder %s23, %s26
    %p35 = scmp.eq.s32.totalorder %s18, 1
    %p36 = por %p34, %p35
    %p37 = scmp.ne.s32.totalorder %s26, %s27
    %p38 = scmp.eq.s32.totalorder %s18, 0
    %p39 = por %p37, %p38
    %p40 = scmp.ne.s32.totalorder %s26, %s27
    %p41 = scmp.eq.s32.totalorder %s19, 1
    %p42 = por %p40, %p41
    %p44 = scmp.ne.s32.totalorder %s27, %s43
    %p45 = scmp.eq.s32.totalorder %s19, 0
    %p46 = por %p44, %p45
    %s48 = sadd.s32 %s47, 1
    %p51 = scmp.eq.s32.totalorder %s13, 1
    %p52 = scmp.ne.s32.totalorder %s47, %s49
    %p53 = scmp.eq.s32.totalorder %s13, 0
    %p54 = por %p52, %p53
    %p55 = scmp.ne.s32.totalorder %s47, %s49
    %p56 = scmp.eq.s32.totalorder %s18, 1
    %p57 = por %p55, %p56
    %p58 = scmp.ne.s32.totalorder %s49, %s50
    %p59 = scmp.eq.s32.totalorder %s18, 0
    %p60 = por %p58, %p59
    %p61 = scmp.ne.s32.totalorder %s49, %s50
    %p62 = scmp.eq.s32.totalorder %s19, 1
    %p63 = por %p61, %p62
    %p65 = scmp.ne.s32.totalorder %s50, %s64
    %p66 = scmp.eq.s32.totalorder %s19, 0
    %p67 = por %p65, %p66
    %s69 = sadd.s32 %s68, 1
    %p72 = scmp.eq.s32.totalorder %s13, 1
    %p73 = scmp.ne.s32.totalorder %s68, %s70
    %p74 = scmp.eq.s32.totalorder %s13, 0
    %p75 = por %p73, %p74
    %p76 = scmp.ne.s32.totalorder %s68, %s70
    %p77 = scmp.eq.s32.totalorder %s18, 1
    %p78 = por %p76, %p77
    %p79 = scmp.ne.s32.totalorder %s70, %s71
    %p80 = scmp.eq.s32.totalorder %s18, 0
    %p81 = por %p79, %p80
    %p82 = scmp.ne.s32.totalorder %s70, %s71
    %p83 = scmp.eq.s32.totalorder %s19, 1
    %p84 = por %p82, %p83
    %p86 = scmp.ne.s32.totalorder %s71, %s85
    %p87 = scmp.eq.s32.totalorder %s19, 0
    %p88 = por %p86, %p87
    %s90 = sadd.s32 %s89, 1
    %p93 = scmp.eq.s32.totalorder %s13, 1
    %p94 = scmp.ne.s32.totalorder %s89, %s91
    %p95 = scmp.eq.s32.totalorder %s13, 0
    %p96 = por %p94, %p95
    %p97 = scmp.ne.s32.totalorder %s89, %s91
    %p98 = scmp.eq.s32.totalorder %s18, 1
    %p99 = por %p97, %p98
    %p100 = scmp.ne.s32.totalorder %s91, %s92
    %p101 = scmp.eq.s32.totalorder %s18, 0
    %p102 = por %p100, %p101
    %p103 = scmp.ne.s32.totalorder %s91, %s92
    %p104 = scmp.eq.s32.totalorder %s19, 1
    %p105 = por %p103, %p104
    %p107 = scmp.ne.s32.totalorder %s92, %s106
    %p108 = scmp.eq.s32.totalorder %s19, 0
    %p109 = por %p107, %p108
    %s111 = sadd.s32 %s110, 1
    %p114 = scmp.eq.s32.totalorder %s13, 1
    %p115 = scmp.ne.s32.totalorder %s110, %s112
    %p116 = scmp.eq.s32.totalorder %s13, 0
    %p117 = por %p115, %p116
    %p118 = scmp.ne.s32.totalorder %s110, %s112
    %p119 = scmp.eq.s32.totalorder %s18, 1
    %p120 = por %p118, %p119
    %p121 = scmp.ne.s32.totalorder %s112, %s113
    %p122 = scmp.eq.s32.totalorder %s18, 0
    %p123 = por %p121, %p122
    %p124 = scmp.ne.s32.totalorder %s112, %s113
    %p125 = scmp.eq.s32.totalorder %s19, 1
    %p126 = por %p124, %p125
    %p128 = scmp.ne.s32.totalorder %s113, %s127
    %p129 = scmp.eq.s32.totalorder %s19, 0
    %p130 = por %p128, %p129
    %s132 = sadd.s32 %s131, 1
    %p135 = scmp.eq.s32.totalorder %s13, 1
    %p136 = scmp.ne.s32.totalorder %s131, %s133
    %p137 = scmp.eq.s32.totalorder %s13, 0
    %p138 = por %p136, %p137
    %p139 = scmp.ne.s32.totalorder %s131, %s133
    %p140 = scmp.eq.s32.totalorder %s18, 1
    %p141 = por %p139, %p140
    %p142 = scmp.ne.s32.totalorder %s133, %s134
    %p143 = scmp.eq.s32.totalorder %s18, 0
    %p144 = por %p142, %p143
    %p145 = scmp.ne.s32.totalorder %s133, %s134
    %p146 = scmp.eq.s32.totalorder %s19, 1
    %p147 = por %p145, %p146
    %p149 = scmp.ne.s32.totalorder %s134, %s148
    %p150 = scmp.eq.s32.totalorder %s19, 0
    %p151 = por %p149, %p150
    %s153 = sadd.s32 %s152, 1
    %p156 = scmp.eq.s32.totalorder %s13, 1
    %p157 = scmp.ne.s32.totalorder %s152, %s154
    %p158 = scmp.eq.s32.totalorder %s13, 0
    %p159 = por %p157, %p158
    %p160 = scmp.ne.s32.totalorder %s152, %s154
    %p161 = scmp.eq.s32.totalorder %s18, 1
    %p162 = por %p160, %p161
    %p163 = scmp.ne.s32.totalorder %s154, %s155
    %p164 = scmp.eq.s32.totalorder %s18, 0
    %p165 = por %p163, %p164
    %p166 = scmp.ne.s32.totalorder %s154, %s155
    %p167 = scmp.eq.s32.totalorder %s19, 1
    %p168 = por %p166, %p167
    %p170 = scmp.ne.s32.totalorder %s155, %s169
    %p171 = scmp.eq.s32.totalorder %s19, 0
    %p172 = por %p170, %p171
    %s173 = ssub.s32 %s13, %s20
    %p174 = scmp.eq.s32.totalorder %s173, 0
    %s176 = sadd.s32 %s175, 1
    %s177 = scalar_select %p174, %s175, %s176
    %p180 = pneg %p174
    %p181 = scmp.eq.s32.totalorder %s13, 1
    %p182 = por %p180, %p181
    %p183 = scmp.ne.s32.totalorder %s175, %s178
    %p184 = scmp.eq.s32.totalorder %s13, 0
    %p185 = por %p183, %p184
    %p186 = scmp.ne.s32.totalorder %s175, %s178
    %p187 = scmp.eq.s32.totalorder %s18, 1
    %p188 = por %p186, %p187
    %p189 = scmp.ne.s32.totalorder %s178, %s179
    %p190 = scmp.eq.s32.totalorder %s18, 0
    %p191 = por %p189, %p190
    %p192 = scmp.ne.s32.totalorder %s178, %s179
    %p193 = scmp.eq.s32.totalorder %s19, 1
    %p194 = por %p192, %p193
    %p196 = scmp.ne.s32.totalorder %s179, %s195
    %p197 = scmp.eq.s32.totalorder %s19, 0
    %p198 = por %p196, %p197
    %p199 = scmp.le.s32.totalorder 1, %s13
    %p200 = scmp.lt.s32.totalorder %s13, 3
    %p201 = pnand %p199, %p200
    %p202 = pneg %p201
    // Predicated region
    $region9: #{dense_layer_forward.1} parent=5 // pred_check
      _
    $region10: #{dense_layer_forward.1} parent=5 // pred_check_branch
      %204 = sbr.rel (%p201) target = $region12
    $region11: #{dense_layer_forward.1} parent=5 // pred_region
      %s205 = ssub.s32 %s13, 1
      // Predicated region
      $region13: #{dense_layer_forward.1} parent=11 // pred_check
        %p206 = pneg %p60
      $region14: #{dense_layer_forward.1} parent=11 // pred_check_branch
        %208 = sbr.rel (%p206) target = $region16
      $region15: #{dense_layer_forward.1} parent=11 // pred_region
        _
      $region16: #{dense_layer_forward.1} parent=11 // pred_fallthru
        _
      // Predicated region
      $region17: #{dense_layer_forward.1} parent=11 // pred_check
        %p209 = pneg %p81
      $region18: #{dense_layer_forward.1} parent=11 // pred_check_branch
        %211 = sbr.rel (%p209) target = $region20
      $region19: #{dense_layer_forward.1} parent=11 // pred_region
        _
      $region20: #{dense_layer_forward.1} parent=11 // pred_fallthru
        _
      // Predicated region
      $region21: #{dense_layer_forward.1} parent=11 // pred_check
        %p212 = pneg %p102
      $region22: #{dense_layer_forward.1} parent=11 // pred_check_branch
        %214 = sbr.rel (%p212) target = $region24
      $region23: #{dense_layer_forward.1} parent=11 // pred_region
        _
      $region24: #{dense_layer_forward.1} parent=11 // pred_fallthru
        _
      // Predicated region
      $region25: #{dense_layer_forward.1} parent=11 // pred_check
        %p215 = pneg %p123
      $region26: #{dense_layer_forward.1} parent=11 // pred_check_branch
        %217 = sbr.rel (%p215) target = $region28
      $region27: #{dense_layer_forward.1} parent=11 // pred_region
        _
      $region28: #{dense_layer_forward.1} parent=11 // pred_fallthru
        _
      // Predicated region
      $region29: #{dense_layer_forward.1} parent=11 // pred_check
        %p218 = pneg %p144
      $region30: #{dense_layer_forward.1} parent=11 // pred_check_branch
        %220 = sbr.rel (%p218) target = $region32
      $region31: #{dense_layer_forward.1} parent=11 // pred_region
        _
      $region32: #{dense_layer_forward.1} parent=11 // pred_fallthru
        _
      // Predicated region
      $region33: #{dense_layer_forward.1} parent=11 // pred_check
        %p221 = pneg %p165
      $region34: #{dense_layer_forward.1} parent=11 // pred_check_branch
        %223 = sbr.rel (%p221) target = $region36
      $region35: #{dense_layer_forward.1} parent=11 // pred_region
        _
      $region36: #{dense_layer_forward.1} parent=11 // pred_fallthru
        _
    $region12: #{dense_layer_forward.1} parent=5 // pred_fallthru
      _
    %p224 = scmp.lt.s32.totalorder %s13, 2
    // Predicated region
    $region37: #{dense_layer_forward.1} parent=5 // pred_check
      %p225 = pneg %p224
    $region38: #{dense_layer_forward.1} parent=5 // pred_check_branch
      %227 = sbr.rel (%p225) target = $region40
    $region39: #{dense_layer_forward.1} parent=5 // pred_region
      // Predicated region
      $region41: #{dense_layer_forward.1} parent=39 // pred_check
        %p228 = pneg %p33
      $region42: #{dense_layer_forward.1} parent=39 // pred_check_branch
        %230 = sbr.rel (%p228) target = $region44
      $region43: #{dense_layer_forward.1} parent=39 // pred_region
        %p231 = scmp.lt.s32.totalorder %s13, 1
        %s232 = scalar_select %p231, %s13, 1
        %s233 = smul.addr %s232, 32
        %s234 = smul.addr %s233, 8
        %s235 = scalar_lea.vmem %s0, %s234
      $region44: #{dense_layer_forward.1} parent=39 // pred_fallthru
        _
    $region40: #{dense_layer_forward.1} parent=5 // pred_fallthru
      _
    %p236 = scmp.le.s32.totalorder 1, %s13
    %p237 = scmp.lt.s32.totalorder %s13, 3
    %p238 = pnand %p236, %p237
    %p239 = pneg %p238
    // Predicated region
    $region45: #{dense_layer_forward.1} parent=5 // pred_check
      _
    $region46: #{dense_layer_forward.1} parent=5 // pred_check_branch
      %241 = sbr.rel (%p238) target = $region48
    $region47: #{dense_layer_forward.1} parent=5 // pred_region
      %s242 = ssub.s32 %s13, 1
      %p243 = scmp.lt.s32.totalorder %s18, 1
      %s244 = scalar_select %p243, %s18, 1
      %s245 = smul.addr %s244, 32
      %s246 = smul.addr %s245, 8
      %s247 = scalar_lea.vmem %s0, %s246
      %p248 = pneg %p39
      %p249 = pneg %p36
      %p250 = pneg %p60
      %p251 = pneg %p57
      %p252 = pneg %p81
      %p253 = pneg %p78
      %p254 = pneg %p102
      %p255 = pneg %p99
      %p256 = pneg %p123
      %p257 = pneg %p120
      %p258 = pneg %p144
      %p259 = pneg %p141
      %p260 = pneg %p165
      %p261 = pneg %p162
      %p262 = pneg %p191
      %p263 = pneg %p188
      %p264 = scmp.lt.s32.totalorder %s18, 1
      %s265 = scalar_select %p264, %s18, 1
      %s266 = smul.addr %s265, 32
      %s267 = smul.addr %s266, 8
      %s268 = scalar_lea.vmem %s7, %s267
      %p269 = scmp.lt.s32.totalorder %s18, 1
      %s270 = scalar_select %p269, %s18, 1
      %s271 = smul.addr %s270, 32
      %s272 = smul.addr %s271, 8
      %s273 = scalar_lea.vmem %s0, %s272
      %p274 = scmp.lt.s32.totalorder %s18, 1
      %s275 = scalar_select %p274, %s18, 1
      %s276 = smul.addr %s275, 32
      %s277 = smul.addr %s276, 8
      %s278 = scalar_lea.vmem %s7, %s277
      %v280 = vld [vmem:[%s273] sm:$0xff]
      %v281 = vld [vmem:[%s273 + $0x8] sm:$0xff]
      %v282 = vld [vmem:[%s273 + $0x10] sm:$0xff]
      %v283 = vld [vmem:[%s273 + $0x18] sm:$0xff]
      %v284 = vld [vmem:[%s273 + $0x20] sm:$0xff]
      %v285 = vld [vmem:[%s273 + $0x28] sm:$0xff]
      %v286 = vld [vmem:[%s273 + $0x30] sm:$0xff]
      %v287 = vld [vmem:[%s273 + $0x38] sm:$0xff]
      %v288 = vld [vmem:[%s273 + $0x40] sm:$0xff]
      %v289 = vld [vmem:[%s273 + $0x48] sm:$0xff]
      %v290 = vld [vmem:[%s273 + $0x50] sm:$0xff]
      %v291 = vld [vmem:[%s273 + $0x58] sm:$0xff]
      %v292 = vld [vmem:[%s273 + $0x60] sm:$0xff]
      %v293 = vld [vmem:[%s273 + $0x68] sm:$0xff]
      %v294 = vld [vmem:[%s273 + $0x70] sm:$0xff]
      %v295 = vld [vmem:[%s273 + $0x78] sm:$0xff]
      %v296 = vld [vmem:[%s273 + $0x80] sm:$0xff]
      %v297 = vld [vmem:[%s273 + $0x88] sm:$0xff]
      %v298 = vld [vmem:[%s273 + $0x90] sm:$0xff]
      %v299 = vld [vmem:[%s273 + $0x98] sm:$0xff]
      %v300 = vld [vmem:[%s273 + $0xa0] sm:$0xff]
      %v301 = vld [vmem:[%s273 + $0xa8] sm:$0xff]
      %v302 = vld [vmem:[%s273 + $0xb0] sm:$0xff]
      %v303 = vld [vmem:[%s273 + $0xb8] sm:$0xff]
      %v304 = vld [vmem:[%s273 + $0xc0] sm:$0xff]
      %v305 = vld [vmem:[%s273 + $0xc8] sm:$0xff]
      %v306 = vld [vmem:[%s273 + $0xd0] sm:$0xff]
      %v307 = vld [vmem:[%s273 + $0xd8] sm:$0xff]
      %v308 = vld [vmem:[%s273 + $0xe0] sm:$0xff]
      %v309 = vld [vmem:[%s273 + $0xe8] sm:$0xff]
      %v310 = vld [vmem:[%s273 + $0xf0] sm:$0xff]
      %v311 = vld [vmem:[%s273 + $0xf8] sm:$0xff]
      %v312 = vld [vmem:[%s1] sm:$0x1]
      %v314 = vperm.slane %v312, 0
      %v316 = vmul.f32 %v280, %v314
      %v317 = vmul.f32 %v281, %v314
      %v318 = vmul.f32 %v282, %v314
      %v319 = vmul.f32 %v283, %v314
      %v320 = vmul.f32 %v284, %v314
      %v321 = vmul.f32 %v285, %v314
      %v322 = vmul.f32 %v286, %v314
      %v323 = vmul.f32 %v287, %v314
      %v324 = vmul.f32 %v288, %v314
      %v325 = vmul.f32 %v289, %v314
      %v326 = vmul.f32 %v290, %v314
      %v327 = vmul.f32 %v291, %v314
      %v328 = vmul.f32 %v292, %v314
      %v329 = vmul.f32 %v293, %v314
      %v330 = vmul.f32 %v294, %v314
      %v331 = vmul.f32 %v295, %v314
      %v332 = vmul.f32 %v296, %v314
      %v333 = vmul.f32 %v297, %v314
      %v334 = vmul.f32 %v298, %v314
      %v335 = vmul.f32 %v299, %v314
      %v336 = vmul.f32 %v300, %v314
      %v337 = vmul.f32 %v301, %v314
      %v338 = vmul.f32 %v302, %v314
      %v339 = vmul.f32 %v303, %v314
      %v340 = vmul.f32 %v304, %v314
      %v341 = vmul.f32 %v305, %v314
      %v342 = vmul.f32 %v306, %v314
      %v343 = vmul.f32 %v307, %v314
      %v344 = vmul.f32 %v308, %v314
      %v345 = vmul.f32 %v309, %v314
      %v346 = vmul.f32 %v310, %v314
      %v347 = vmul.f32 %v311, %v314
      %v348 = vld [vmem:[%s2] sm:$0x1]
      %v350 = vperm.slane %v348, 0
      %v352 = vadd.f32 %v316, %v350
      %v353 = vadd.f32 %v317, %v350
      %v354 = vadd.f32 %v318, %v350
      %v355 = vadd.f32 %v319, %v350
      %v356 = vadd.f32 %v320, %v350
      %v357 = vadd.f32 %v321, %v350
      %v358 = vadd.f32 %v322, %v350
      %v359 = vadd.f32 %v323, %v350
      %v360 = vadd.f32 %v324, %v350
      %v361 = vadd.f32 %v325, %v350
      %v362 = vadd.f32 %v326, %v350
      %v363 = vadd.f32 %v327, %v350
      %v364 = vadd.f32 %v328, %v350
      %v365 = vadd.f32 %v329, %v350
      %v366 = vadd.f32 %v330, %v350
      %v367 = vadd.f32 %v331, %v350
      %v368 = vadd.f32 %v332, %v350
      %v369 = vadd.f32 %v333, %v350
      %v370 = vadd.f32 %v334, %v350
      %v371 = vadd.f32 %v335, %v350
      %v372 = vadd.f32 %v336, %v350
      %v373 = vadd.f32 %v337, %v350
      %v374 = vadd.f32 %v338, %v350
      %v375 = vadd.f32 %v339, %v350
      %v376 = vadd.f32 %v340, %v350
      %v377 = vadd.f32 %v341, %v350
      %v378 = vadd.f32 %v342, %v350
      %v379 = vadd.f32 %v343, %v350
      %v380 = vadd.f32 %v344, %v350
      %v381 = vadd.f32 %v345, %v350
      %v382 = vadd.f32 %v346, %v350
      %v383 = vadd.f32 %v347, %v350
      %v384 = vmax.f32 %v352, 0.0
      %v385 = vmax.f32 %v353, 0.0
      %v386 = vmax.f32 %v354, 0.0
      %v387 = vmax.f32 %v355, 0.0
      %v388 = vmax.f32 %v356, 0.0
      %v389 = vmax.f32 %v357, 0.0
      %v390 = vmax.f32 %v358, 0.0
      %v391 = vmax.f32 %v359, 0.0
      %v392 = vmax.f32 %v360, 0.0
      %v393 = vmax.f32 %v361, 0.0
      %v394 = vmax.f32 %v362, 0.0
      %v395 = vmax.f32 %v363, 0.0
      %v396 = vmax.f32 %v364, 0.0
      %v397 = vmax.f32 %v365, 0.0
      %v398 = vmax.f32 %v366, 0.0
      %v399 = vmax.f32 %v367, 0.0
      %v400 = vmax.f32 %v368, 0.0
      %v401 = vmax.f32 %v369, 0.0
      %v402 = vmax.f32 %v370, 0.0
      %v403 = vmax.f32 %v371, 0.0
      %v404 = vmax.f32 %v372, 0.0
      %v405 = vmax.f32 %v373, 0.0
      %v406 = vmax.f32 %v374, 0.0
      %v407 = vmax.f32 %v375, 0.0
      %v408 = vmax.f32 %v376, 0.0
      %v409 = vmax.f32 %v377, 0.0
      %v410 = vmax.f32 %v378, 0.0
      %v411 = vmax.f32 %v379, 0.0
      %v412 = vmax.f32 %v380, 0.0
      %v413 = vmax.f32 %v381, 0.0
      %v414 = vmax.f32 %v382, 0.0
      %v415 = vmax.f32 %v383, 0.0
      %v416 = vpack.c.bf16 %v385, %v384
      %v417 = vpack.c.bf16 %v387, %v386
      %v418 = vpack.c.bf16 %v389, %v388
      %v419 = vpack.c.bf16 %v391, %v390
      %v420 = vpack.c.bf16 %v393, %v392
      %v421 = vpack.c.bf16 %v395, %v394
      %v422 = vpack.c.bf16 %v397, %v396
      %v423 = vpack.c.bf16 %v399, %v398
      %v424 = vpack.c.bf16 %v401, %v400
      %v425 = vpack.c.bf16 %v403, %v402
      %v426 = vpack.c.bf16 %v405, %v404
      %v427 = vpack.c.bf16 %v407, %v406
      %v428 = vpack.c.bf16 %v409, %v408
      %v429 = vpack.c.bf16 %v411, %v410
      %v430 = vpack.c.bf16 %v413, %v412
      %v431 = vpack.c.bf16 %v415, %v414
      %v432 = vld [vmem:[%s3] sm:$0xf]
      %vm433 = vcmask 64512
      %v435 = vsel %vm433, %v416, 0
      %v438 = vsel %vm433, %v417, 0
      %v441 = vsel %vm433, %v418, 0
      %v444 = vsel %vm433, %v419, 0
      %v447 = vsel %vm433, %v420, 0
      %v450 = vsel %vm433, %v421, 0
      %v453 = vsel %vm433, %v422, 0
      %v456 = vsel %vm433, %v423, 0
      %v459 = vsel %vm433, %v424, 0
      %v462 = vsel %vm433, %v425, 0
      %v465 = vsel %vm433, %v426, 0
      %v468 = vsel %vm433, %v427, 0
      %v471 = vsel %vm433, %v428, 0
      %v474 = vsel %vm433, %v429, 0
      %v477 = vsel %vm433, %v430, 0
      %v480 = vsel %vm433, %v431, 0
      %vm482 = vcmask 1043456
      %v484 = vsel %vm482, %v432, 0
      %486 = vmatpush.bf16.msra.mxu0 0
      %487 = vmatpush.bf16.msra.mxu0 0
      %488 = vmatpush.bf16.msra.mxu0 0
      %489 = vmatpush.bf16.msra.mxu0 0
      %490 = vmatpush.bf16.msra.mxu0 0
      %491 = vmatpush.bf16.msra.mxu0 0
      %492 = vmatpush.bf16.msra.mxu0 0
      %493 = vmatpush.bf16.msra.mxu0 %v484
      %494 = vmatmul.bf16.gmra.mxu0 %v435
      %v495 = vpop.f32.mrf.mxu0
      %v496 = vadd.f32 0.0, %v495
      %v497 = vpop.f32.mrf.mxu0
      %v498 = vadd.f32 0.0, %v497
      %499 = vmatmul.bf16.gmra.mxu0 %v438
      %v500 = vpop.f32.mrf.mxu0
      %v501 = vadd.f32 0.0, %v500
      %v502 = vpop.f32.mrf.mxu0
      %v503 = vadd.f32 0.0, %v502
      %504 = vmatmul.bf16.gmra.mxu0 %v441
      %v505 = vpop.f32.mrf.mxu0
      %v506 = vadd.f32 0.0, %v505
      %v507 = vpop.f32.mrf.mxu0
      %v508 = vadd.f32 0.0, %v507
      %509 = vmatmul.bf16.gmra.mxu0 %v444
      %v510 = vpop.f32.mrf.mxu0
      %v511 = vadd.f32 0.0, %v510
      %v512 = vpop.f32.mrf.mxu0
      %v513 = vadd.f32 0.0, %v512
      %514 = vmatmul.bf16.gmra.mxu0 %v447
      %v515 = vpop.f32.mrf.mxu0
      %v516 = vadd.f32 0.0, %v515
      %v517 = vpop.f32.mrf.mxu0
      %v518 = vadd.f32 0.0, %v517
      %519 = vmatmul.bf16.gmra.mxu0 %v450
      %v520 = vpop.f32.mrf.mxu0
      %v521 = vadd.f32 0.0, %v520
      %v522 = vpop.f32.mrf.mxu0
      %v523 = vadd.f32 0.0, %v522
      %524 = vmatmul.bf16.gmra.mxu0 %v453
      %v525 = vpop.f32.mrf.mxu0
      %v526 = vadd.f32 0.0, %v525
      %v527 = vpop.f32.mrf.mxu0
      %v528 = vadd.f32 0.0, %v527
      %529 = vmatmul.bf16.gmra.mxu0 %v456
      %v530 = vpop.f32.mrf.mxu0
      %v531 = vadd.f32 0.0, %v530
      %v532 = vpop.f32.mrf.mxu0
      %v533 = vadd.f32 0.0, %v532
      %534 = vmatmul.bf16.gmra.mxu0 %v459
      %v535 = vpop.f32.mrf.mxu0
      %v536 = vadd.f32 0.0, %v535
      %v537 = vpop.f32.mrf.mxu0
      %v538 = vadd.f32 0.0, %v537
      %539 = vmatmul.bf16.gmra.mxu0 %v462
      %v540 = vpop.f32.mrf.mxu0
      %v541 = vadd.f32 0.0, %v540
      %v542 = vpop.f32.mrf.mxu0
      %v543 = vadd.f32 0.0, %v542
      %544 = vmatmul.bf16.gmra.mxu0 %v465
      %v545 = vpop.f32.mrf.mxu0
      %v546 = vadd.f32 0.0, %v545
      %v547 = vpop.f32.mrf.mxu0
      %v548 = vadd.f32 0.0, %v547
      %549 = vmatmul.bf16.gmra.mxu0 %v468
      %v550 = vpop.f32.mrf.mxu0
      %v551 = vadd.f32 0.0, %v550
      %v552 = vpop.f32.mrf.mxu0
      %v553 = vadd.f32 0.0, %v552
      %554 = vmatmul.bf16.gmra.mxu0 %v471
      %v555 = vpop.f32.mrf.mxu0
      %v556 = vadd.f32 0.0, %v555
      %v557 = vpop.f32.mrf.mxu0
      %v558 = vadd.f32 0.0, %v557
      %559 = vmatmul.bf16.gmra.mxu0 %v474
      %v560 = vpop.f32.mrf.mxu0
      %v561 = vadd.f32 0.0, %v560
      %v562 = vpop.f32.mrf.mxu0
      %v563 = vadd.f32 0.0, %v562
      %564 = vmatmul.bf16.gmra.mxu0 %v477
      %v565 = vpop.f32.mrf.mxu0
      %v566 = vadd.f32 0.0, %v565
      %v567 = vpop.f32.mrf.mxu0
      %v568 = vadd.f32 0.0, %v567
      %569 = vmatmul.bf16.gmra.mxu0 %v480
      %v570 = vpop.f32.mrf.mxu0
      %v571 = vadd.f32 0.0, %v570
      %v572 = vpop.f32.mrf.mxu0
      %v573 = vadd.f32 0.0, %v572
      %574 = vdwg.mxu0
      %v575 = vld [vmem:[%s4] sm:$0x1]
      %v577 = vperm.slane %v575, 0
      %v579 = vmul.f32 %v496, %v577
      %v580 = vmul.f32 %v498, %v577
      %v581 = vmul.f32 %v501, %v577
      %v582 = vmul.f32 %v503, %v577
      %v583 = vmul.f32 %v506, %v577
      %v584 = vmul.f32 %v508, %v577
      %v585 = vmul.f32 %v511, %v577
      %v586 = vmul.f32 %v513, %v577
      %v587 = vmul.f32 %v516, %v577
      %v588 = vmul.f32 %v518, %v577
      %v589 = vmul.f32 %v521, %v577
      %v590 = vmul.f32 %v523, %v577
      %v591 = vmul.f32 %v526, %v577
      %v592 = vmul.f32 %v528, %v577
      %v593 = vmul.f32 %v531, %v577
      %v594 = vmul.f32 %v533, %v577
      %v595 = vmul.f32 %v536, %v577
      %v596 = vmul.f32 %v538, %v577
      %v597 = vmul.f32 %v541, %v577
      %v598 = vmul.f32 %v543, %v577
      %v599 = vmul.f32 %v546, %v577
      %v600 = vmul.f32 %v548, %v577
      %v601 = vmul.f32 %v551, %v577
      %v602 = vmul.f32 %v553, %v577
      %v603 = vmul.f32 %v556, %v577
      %v604 = vmul.f32 %v558, %v577
      %v605 = vmul.f32 %v561, %v577
      %v606 = vmul.f32 %v563, %v577
      %v607 = vmul.f32 %v566, %v577
      %v608 = vmul.f32 %v568, %v577
      %v609 = vmul.f32 %v571, %v577
      %v610 = vmul.f32 %v573, %v577
      %v611 = vld [vmem:[%s5] sm:$0x1]
      %v613 = vperm.slane %v611, 0
      %v615 = vadd.f32 %v579, %v613
      %v616 = vadd.f32 %v580, %v613
      %v617 = vadd.f32 %v581, %v613
      %v618 = vadd.f32 %v582, %v613
      %v619 = vadd.f32 %v583, %v613
      %v620 = vadd.f32 %v584, %v613
      %v621 = vadd.f32 %v585, %v613
      %v622 = vadd.f32 %v586, %v613
      %v623 = vadd.f32 %v587, %v613
      %v624 = vadd.f32 %v588, %v613
      %v625 = vadd.f32 %v589, %v613
      %v626 = vadd.f32 %v590, %v613
      %v627 = vadd.f32 %v591, %v613
      %v628 = vadd.f32 %v592, %v613
      %v629 = vadd.f32 %v593, %v613
      %v630 = vadd.f32 %v594, %v613
      %v631 = vadd.f32 %v595, %v613
      %v632 = vadd.f32 %v596, %v613
      %v633 = vadd.f32 %v597, %v613
      %v634 = vadd.f32 %v598, %v613
      %v635 = vadd.f32 %v599, %v613
      %v636 = vadd.f32 %v600, %v613
      %v637 = vadd.f32 %v601, %v613
      %v638 = vadd.f32 %v602, %v613
      %v639 = vadd.f32 %v603, %v613
      %v640 = vadd.f32 %v604, %v613
      %v641 = vadd.f32 %v605, %v613
      %v642 = vadd.f32 %v606, %v613
      %v643 = vadd.f32 %v607, %v613
      %v644 = vadd.f32 %v608, %v613
      %v645 = vadd.f32 %v609, %v613
      %v646 = vadd.f32 %v610, %v613
      %v647 = vmax.f32 %v615, 0.0
      %v648 = vmax.f32 %v616, 0.0
      %v649 = vmax.f32 %v617, 0.0
      %v650 = vmax.f32 %v618, 0.0
      %v651 = vmax.f32 %v619, 0.0
      %v652 = vmax.f32 %v620, 0.0
      %v653 = vmax.f32 %v621, 0.0
      %v654 = vmax.f32 %v622, 0.0
      %v655 = vmax.f32 %v623, 0.0
      %v656 = vmax.f32 %v624, 0.0
      %v657 = vmax.f32 %v625, 0.0
      %v658 = vmax.f32 %v626, 0.0
      %v659 = vmax.f32 %v627, 0.0
      %v660 = vmax.f32 %v628, 0.0
      %v661 = vmax.f32 %v629, 0.0
      %v662 = vmax.f32 %v630, 0.0
      %v663 = vmax.f32 %v631, 0.0
      %v664 = vmax.f32 %v632, 0.0
      %v665 = vmax.f32 %v633, 0.0
      %v666 = vmax.f32 %v634, 0.0
      %v667 = vmax.f32 %v635, 0.0
      %v668 = vmax.f32 %v636, 0.0
      %v669 = vmax.f32 %v637, 0.0
      %v670 = vmax.f32 %v638, 0.0
      %v671 = vmax.f32 %v639, 0.0
      %v672 = vmax.f32 %v640, 0.0
      %v673 = vmax.f32 %v641, 0.0
      %v674 = vmax.f32 %v642, 0.0
      %v675 = vmax.f32 %v643, 0.0
      %v676 = vmax.f32 %v644, 0.0
      %v677 = vmax.f32 %v645, 0.0
      %v678 = vmax.f32 %v646, 0.0
      %vm679 = vcmask 261120
      %680 = vst.msk [vmem:[#allocation2] sm:$0xff] %vm679, 0.0
      %681 = vst.msk [vmem:[#allocation2 + $0x8] sm:$0xff] %vm679, 0.0
      %vm682 = vcmask 254976
      %683 = vst.msk [vmem:[#allocation2 + $0x10] sm:$0x3] %vm682, 0.0
      %684 = vst.msk [vmem:[#allocation2 + $0x18] sm:$0xff] %vm679, 0.0
      %685 = vst.msk [vmem:[#allocation2 + $0x20] sm:$0xff] %vm679, 0.0
      %686 = vst.msk [vmem:[#allocation2 + $0x28] sm:$0x3] %vm682, 0.0
      %687 = vst.msk [vmem:[#allocation2 + $0x30] sm:$0xff] %vm679, 0.0
      %688 = vst.msk [vmem:[#allocation2 + $0x38] sm:$0xff] %vm679, 0.0
      %689 = vst.msk [vmem:[#allocation2 + $0x40] sm:$0x3] %vm682, 0.0
      %690 = vst.msk [vmem:[#allocation2 + $0x48] sm:$0xff] %vm679, 0.0
      %691 = vst.msk [vmem:[#allocation2 + $0x50] sm:$0xff] %vm679, 0.0
      %692 = vst.msk [vmem:[#allocation2 + $0x58] sm:$0x3] %vm682, 0.0
      %693 = vst.msk [vmem:[#allocation2 + $0x60] sm:$0xff] %vm679, 0.0
      %694 = vst.msk [vmem:[#allocation2 + $0x68] sm:$0xff] %vm679, 0.0
      %695 = vst.msk [vmem:[#allocation2 + $0x70] sm:$0x3] %vm682, 0.0
      %696 = vst.msk [vmem:[#allocation2 + $0x78] sm:$0xff] %vm679, 0.0
      %697 = vst.msk [vmem:[#allocation2 + $0x80] sm:$0xff] %vm679, 0.0
      %698 = vst.msk [vmem:[#allocation2 + $0x88] sm:$0x3] %vm682, 0.0
      %699 = vst.msk [vmem:[#allocation2 + $0x90] sm:$0xff] %vm679, 0.0
      %700 = vst.msk [vmem:[#allocation2 + $0x98] sm:$0xff] %vm679, 0.0
      %701 = vst.msk [vmem:[#allocation2 + $0xa0] sm:$0x3] %vm682, 0.0
      %702 = vst.msk [vmem:[#allocation2 + $0xa8] sm:$0xff] %vm679, 0.0
      %703 = vst.msk [vmem:[#allocation2 + $0xb0] sm:$0xff] %vm679, 0.0
      %704 = vst.msk [vmem:[#allocation2 + $0xb8] sm:$0x3] %vm682, 0.0
      %705 = vst.msk [vmem:[#allocation2 + $0xc0] sm:$0xff] %vm679, 0.0
      %706 = vst.msk [vmem:[#allocation2 + $0xc8] sm:$0xff] %vm679, 0.0
      %707 = vst.msk [vmem:[#allocation2 + $0xd0] sm:$0x3] %vm682, 0.0
      %708 = vst.msk [vmem:[#allocation2 + $0xd8] sm:$0xff] %vm679, 0.0
      %709 = vst.msk [vmem:[#allocation2 + $0xe0] sm:$0xff] %vm679, 0.0
      %710 = vst.msk [vmem:[#allocation2 + $0xe8] sm:$0x3] %vm682, 0.0
      %711 = vst.msk [vmem:[#allocation2 + $0xf0] sm:$0xff] %vm679, 0.0
      %712 = vst.msk [vmem:[#allocation2 + $0xf8] sm:$0xff] %vm679, 0.0
      %713 = vst.msk [vmem:[#allocation2 + $0x100] sm:$0x3] %vm682, 0.0
      %714 = vst.msk [vmem:[#allocation2 + $0x108] sm:$0xff] %vm679, 0.0
      %715 = vst.msk [vmem:[#allocation2 + $0x110] sm:$0xff] %vm679, 0.0
      %716 = vst.msk [vmem:[#allocation2 + $0x118] sm:$0x3] %vm682, 0.0
      %717 = vst.msk [vmem:[#allocation2 + $0x120] sm:$0xff] %vm679, 0.0
      %718 = vst.msk [vmem:[#allocation2 + $0x128] sm:$0xff] %vm679, 0.0
      %719 = vst.msk [vmem:[#allocation2 + $0x130] sm:$0x3] %vm682, 0.0
      %720 = vst.msk [vmem:[#allocation2 + $0x138] sm:$0xff] %vm679, 0.0
      %721 = vst.msk [vmem:[#allocation2 + $0x140] sm:$0xff] %vm679, 0.0
      %722 = vst.msk [vmem:[#allocation2 + $0x148] sm:$0x3] %vm682, 0.0
      %723 = vst.msk [vmem:[#allocation2 + $0x150] sm:$0xff] %vm679, 0.0
      %724 = vst.msk [vmem:[#allocation2 + $0x158] sm:$0xff] %vm679, 0.0
      %725 = vst.msk [vmem:[#allocation2 + $0x160] sm:$0x3] %vm682, 0.0
      %726 = vst.msk [vmem:[#allocation2 + $0x168] sm:$0xff] %vm679, 0.0
      %727 = vst.msk [vmem:[#allocation2 + $0x170] sm:$0xff] %vm679, 0.0
      %728 = vst.msk [vmem:[#allocation2 + $0x178] sm:$0x3] %vm682, 0.0
      %729 = vst.msk [vmem:[#allocation2 + $0x180] sm:$0xff] %vm679, 0.0
      %730 = vst.msk [vmem:[#allocation2 + $0x188] sm:$0xff] %vm679, 0.0
      %731 = vst.msk [vmem:[#allocation2 + $0x190] sm:$0x3] %vm682, 0.0
      %732 = vst.msk [vmem:[#allocation2 + $0x198] sm:$0xff] %vm679, 0.0
      %733 = vst.msk [vmem:[#allocation2 + $0x1a0] sm:$0xff] %vm679, 0.0
      %734 = vst.msk [vmem:[#allocation2 + $0x1a8] sm:$0x3] %vm682, 0.0
      %s735 = scalar_lea.vmem [#allocation2], 24
      %736 = vst.msk [vmem:[%s735 + $0x1] sm:$0xff] %vm679, %v647
      %737 = vst.msk [vmem:[%s735 + $0x9] sm:$0xff] %vm679, %v648
      %738 = vst.msk [vmem:[%s735 + $0x19] sm:$0xff] %vm679, %v649
      %739 = vst.msk [vmem:[%s735 + $0x21] sm:$0xff] %vm679, %v650
      %740 = vst.msk [vmem:[%s735 + $0x31] sm:$0xff] %vm679, %v651
      %741 = vst.msk [vmem:[%s735 + $0x39] sm:$0xff] %vm679, %v652
      %742 = vst.msk [vmem:[%s735 + $0x49] sm:$0xff] %vm679, %v653
      %743 = vst.msk [vmem:[%s735 + $0x51] sm:$0xff] %vm679, %v654
      %744 = vst.msk [vmem:[%s735 + $0x61] sm:$0xff] %vm679, %v655
      %745 = vst.msk [vmem:[%s735 + $0x69] sm:$0xff] %vm679, %v656
      %746 = vst.msk [vmem:[%s735 + $0x79] sm:$0xff] %vm679, %v657
      %747 = vst.msk [vmem:[%s735 + $0x81] sm:$0xff] %vm679, %v658
      %748 = vst.msk [vmem:[%s735 + $0x91] sm:$0xff] %vm679, %v659
      %749 = vst.msk [vmem:[%s735 + $0x99] sm:$0xff] %vm679, %v660
      %750 = vst.msk [vmem:[%s735 + $0xa9] sm:$0xff] %vm679, %v661
      %751 = vst.msk [vmem:[%s735 + $0xb1] sm:$0xff] %vm679, %v662
      %752 = vst.msk [vmem:[%s735 + $0xc1] sm:$0xff] %vm679, %v663
      %753 = vst.msk [vmem:[%s735 + $0xc9] sm:$0xff] %vm679, %v664
      %754 = vst.msk [vmem:[%s735 + $0xd9] sm:$0xff] %vm679, %v665
      %755 = vst.msk [vmem:[%s735 + $0xe1] sm:$0xff] %vm679, %v666
      %756 = vst.msk [vmem:[%s735 + $0xf1] sm:$0xff] %vm679, %v667
      %757 = vst.msk [vmem:[%s735 + $0xf9] sm:$0xff] %vm679, %v668
      %758 = vst.msk [vmem:[%s735 + $0x109] sm:$0xff] %vm679, %v669
      %759 = vst.msk [vmem:[%s735 + $0x111] sm:$0xff] %vm679, %v670
      %760 = vst.msk [vmem:[%s735 + $0x121] sm:$0xff] %vm679, %v671
      %761 = vst.msk [vmem:[%s735 + $0x129] sm:$0xff] %vm679, %v672
      %762 = vst.msk [vmem:[%s735 + $0x139] sm:$0xff] %vm679, %v673
      %763 = vst.msk [vmem:[%s735 + $0x141] sm:$0xff] %vm679, %v674
      %764 = vst.msk [vmem:[%s735 + $0x151] sm:$0xff] %vm679, %v675
      %765 = vst.msk [vmem:[%s735 + $0x159] sm:$0xff] %vm679, %v676
      %766 = vst.msk [vmem:[%s735 + $0x169] sm:$0xff] %vm679, %v677
      %767 = vst.msk [vmem:[%s735 + $0x171] sm:$0xff] %vm679, %v678
      %v768 = vld [vmem:[#allocation2] sm:$0xff]
      %v769 = vld [vmem:[#allocation2 + $0x8] sm:$0xff]
      %v770 = vld [vmem:[#allocation2 + $0x10] sm:$0x3]
      %v771 = vld [vmem:[#allocation2 + $0x18] sm:$0xff]
      %v772 = vld [vmem:[#allocation2 + $0x20] sm:$0xff]
      %v773 = vld [vmem:[#allocation2 + $0x28] sm:$0x3]
      %v774 = vld [vmem:[#allocation2 + $0x30] sm:$0xff]
      %v775 = vld [vmem:[#allocation2 + $0x38] sm:$0xff]
      %v776 = vld [vmem:[#allocation2 + $0x40] sm:$0x3]
      %v777 = vld [vmem:[#allocation2 + $0x48] sm:$0xff]
      %v778 = vld [vmem:[#allocation2 + $0x50] sm:$0xff]
      %v779 = vld [vmem:[#allocation2 + $0x58] sm:$0x3]
      %v780 = vld [vmem:[#allocation2 + $0x60] sm:$0xff]
      %v781 = vld [vmem:[#allocation2 + $0x68] sm:$0xff]
      %v782 = vld [vmem:[#allocation2 + $0x70] sm:$0x3]
      %v783 = vld [vmem:[#allocation2 + $0x78] sm:$0xff]
      %v784 = vld [vmem:[#allocation2 + $0x80] sm:$0xff]
      %v785 = vld [vmem:[#allocation2 + $0x88] sm:$0x3]
      %v786 = vld [vmem:[#allocation2 + $0x90] sm:$0xff]
      %v787 = vld [vmem:[#allocation2 + $0x98] sm:$0xff]
      %v788 = vld [vmem:[#allocation2 + $0xa0] sm:$0x3]
      %v789 = vld [vmem:[#allocation2 + $0xa8] sm:$0xff]
      %v790 = vld [vmem:[#allocation2 + $0xb0] sm:$0xff]
      %v791 = vld [vmem:[#allocation2 + $0xb8] sm:$0x3]
      %v792 = vld [vmem:[#allocation2 + $0xc0] sm:$0xff]
      %v793 = vld [vmem:[#allocation2 + $0xc8] sm:$0xff]
      %v794 = vld [vmem:[#allocation2 + $0xd0] sm:$0x3]
      %v795 = vld [vmem:[#allocation2 + $0xd8] sm:$0xff]
      %v796 = vld [vmem:[#allocation2 + $0xe0] sm:$0xff]
      %v797 = vld [vmem:[#allocation2 + $0xe8] sm:$0x3]
      %v798 = vld [vmem:[#allocation2 + $0xf0] sm:$0xff]
      %v799 = vld [vmem:[#allocation2 + $0xf8] sm:$0xff]
      %v800 = vld [vmem:[#allocation2 + $0x100] sm:$0x3]
      %v801 = vld [vmem:[#allocation2 + $0x108] sm:$0xff]
      %v802 = vld [vmem:[#allocation2 + $0x110] sm:$0xff]
      %v803 = vld [vmem:[#allocation2 + $0x118] sm:$0x3]
      %v804 = vld [vmem:[#allocation2 + $0x120] sm:$0xff]
      %v805 = vld [vmem:[#allocation2 + $0x128] sm:$0xff]
      %v806 = vld [vmem:[#allocation2 + $0x130] sm:$0x3]
      %v807 = vld [vmem:[#allocation2 + $0x138] sm:$0xff]
      %v808 = vld [vmem:[#allocation2 + $0x140] sm:$0xff]
      %v809 = vld [vmem:[#allocation2 + $0x148] sm:$0x3]
      %v810 = vld [vmem:[#allocation2 + $0x150] sm:$0xff]
      %v811 = vld [vmem:[#allocation2 + $0x158] sm:$0xff]
      %v812 = vld [vmem:[#allocation2 + $0x160] sm:$0x3]
      %v813 = vld [vmem:[#allocation2 + $0x168] sm:$0xff]
      %v814 = vld [vmem:[#allocation2 + $0x170] sm:$0xff]
      %v815 = vld [vmem:[#allocation2 + $0x178] sm:$0x3]
      %v816 = vld [vmem:[#allocation2 + $0x180] sm:$0xff]
      %v817 = vld [vmem:[#allocation2 + $0x188] sm:$0xff]
      %v818 = vld [vmem:[#allocation2 + $0x190] sm:$0x3]
      %v819 = vld [vmem:[#allocation2 + $0x198] sm:$0xff]
      %v820 = vld [vmem:[#allocation2 + $0x1a0] sm:$0xff]
      %v821 = vld [vmem:[#allocation2 + $0x1a8] sm:$0x3]
      %vm876 = vcmask 1046528
      %v877 = vrot.slane %v768, 1
      %v878 = vrot.slane %v769, 1
      %v879 = vsel %vm876, %v877, %v878
      %v880 = vrot.slane %v770, 1
      %v881 = vsel %vm876, %v878, %v880
      %v882 = vrot.slane %v771, 1
      %v883 = vrot.slane %v772, 1
      %v884 = vsel %vm876, %v882, %v883
      %v885 = vrot.slane %v773, 1
      %v886 = vsel %vm876, %v883, %v885
      %v887 = vrot.slane %v774, 1
      %v888 = vrot.slane %v775, 1
      %v889 = vsel %vm876, %v887, %v888
      %v890 = vrot.slane %v776, 1
      %v891 = vsel %vm876, %v888, %v890
      %v892 = vrot.slane %v777, 1
      %v893 = vrot.slane %v778, 1
      %v894 = vsel %vm876, %v892, %v893
      %v895 = vrot.slane %v779, 1
      %v896 = vsel %vm876, %v893, %v895
      %v897 = vrot.slane %v780, 1
      %v898 = vrot.slane %v781, 1
      %v899 = vsel %vm876, %v897, %v898
      %v900 = vrot.slane %v782, 1
      %v901 = vsel %vm876, %v898, %v900
      %v902 = vrot.slane %v783, 1
      %v903 = vrot.slane %v784, 1
      %v904 = vsel %vm876, %v902, %v903
      %v905 = vrot.slane %v785, 1
      %v906 = vsel %vm876, %v903, %v905
      %v907 = vrot.slane %v786, 1
      %v908 = vrot.slane %v787, 1
      %v909 = vsel %vm876, %v907, %v908
      %v910 = vrot.slane %v788, 1
      %v911 = vsel %vm876, %v908, %v910
      %v912 = vrot.slane %v789, 1
      %v913 = vrot.slane %v790, 1
      %v914 = vsel %vm876, %v912, %v913
      %v915 = vrot.slane %v791, 1
      %v916 = vsel %vm876, %v913, %v915
      %v917 = vrot.slane %v792, 1
      %v918 = vrot.slane %v793, 1
      %v919 = vsel %vm876, %v917, %v918
      %v920 = vrot.slane %v794, 1
      %v921 = vsel %vm876, %v918, %v920
      %v922 = vrot.slane %v795, 1
      %v923 = vrot.slane %v796, 1
      %v924 = vsel %vm876, %v922, %v923
      %v925 = vrot.slane %v797, 1
      %v926 = vsel %vm876, %v923, %v925
      %v927 = vrot.slane %v798, 1
      %v928 = vrot.slane %v799, 1
      %v929 = vsel %vm876, %v927, %v928
      %v930 = vrot.slane %v800, 1
      %v931 = vsel %vm876, %v928, %v930
      %v932 = vrot.slane %v801, 1
      %v933 = vrot.slane %v802, 1
      %v934 = vsel %vm876, %v932, %v933
      %v935 = vrot.slane %v803, 1
      %v936 = vsel %vm876, %v933, %v935
      %v937 = vrot.slane %v804, 1
      %v938 = vrot.slane %v805, 1
      %v939 = vsel %vm876, %v937, %v938
      %v940 = vrot.slane %v806, 1
      %v941 = vsel %vm876, %v938, %v940
      %v942 = vrot.slane %v807, 1
      %v943 = vrot.slane %v808, 1
      %v944 = vsel %vm876, %v942, %v943
      %v945 = vrot.slane %v809, 1
      %v946 = vsel %vm876, %v943, %v945
      %v947 = vrot.slane %v810, 1
      %v948 = vrot.slane %v811, 1
      %v949 = vsel %vm876, %v947, %v948
      %v950 = vrot.slane %v812, 1
      %v951 = vsel %vm876, %v948, %v950
      %v952 = vrot.slane %v813, 1
      %v953 = vrot.slane %v814, 1
      %v954 = vsel %vm876, %v952, %v953
      %v955 = vrot.slane %v815, 1
      %v956 = vsel %vm876, %v953, %v955
      %v957 = vrot.slane %v816, 1
      %v958 = vrot.slane %v817, 1
      %v959 = vsel %vm876, %v957, %v958
      %v960 = vrot.slane %v818, 1
      %v961 = vsel %vm876, %v958, %v960
      %v962 = vrot.slane %v819, 1
      %v963 = vrot.slane %v820, 1
      %v964 = vsel %vm876, %v962, %v963
      %v965 = vrot.slane %v821, 1
      %v966 = vsel %vm876, %v963, %v965
      %967 = vrot.lane.b32.xlu0 %v879, 32
      %v968 = vpop.permute.xlu0 %967
      %969 = vrot.lane.b32.xlu0 %v881, 32
      %v970 = vpop.permute.xlu0 %969
      %971 = vrot.lane.b32.xlu0 %v884, 32
      %v972 = vpop.permute.xlu0 %971
      %973 = vrot.lane.b32.xlu0 %v886, 32
      %v974 = vpop.permute.xlu0 %973
      %975 = vrot.lane.b32.xlu0 %v889, 32
      %v976 = vpop.permute.xlu0 %975
      %977 = vrot.lane.b32.xlu0 %v891, 32
      %v978 = vpop.permute.xlu0 %977
      %979 = vrot.lane.b32.xlu0 %v894, 32
      %v980 = vpop.permute.xlu0 %979
      %981 = vrot.lane.b32.xlu0 %v896, 32
      %v982 = vpop.permute.xlu0 %981
      %983 = vrot.lane.b32.xlu0 %v899, 32
      %v984 = vpop.permute.xlu0 %983
      %985 = vrot.lane.b32.xlu0 %v901, 32
      %v986 = vpop.permute.xlu0 %985
      %987 = vrot.lane.b32.xlu0 %v904, 32
      %v988 = vpop.permute.xlu0 %987
      %989 = vrot.lane.b32.xlu0 %v906, 32
      %v990 = vpop.permute.xlu0 %989
      %991 = vrot.lane.b32.xlu0 %v909, 32
      %v992 = vpop.permute.xlu0 %991
      %993 = vrot.lane.b32.xlu0 %v911, 32
      %v994 = vpop.permute.xlu0 %993
      %995 = vrot.lane.b32.xlu0 %v914, 32
      %v996 = vpop.permute.xlu0 %995
      %997 = vrot.lane.b32.xlu0 %v916, 32
      %v998 = vpop.permute.xlu0 %997
      %999 = vrot.lane.b32.xlu0 %v919, 32
      %v1000 = vpop.permute.xlu0 %999
      %1001 = vrot.lane.b32.xlu0 %v921, 32
      %v1002 = vpop.permute.xlu0 %1001
      %1003 = vrot.lane.b32.xlu0 %v924, 32
      %v1004 = vpop.permute.xlu0 %1003
      %1005 = vrot.lane.b32.xlu0 %v926, 32
      %v1006 = vpop.permute.xlu0 %1005
      %1007 = vrot.lane.b32.xlu0 %v929, 32
      %v1008 = vpop.permute.xlu0 %1007
      %1009 = vrot.lane.b32.xlu0 %v931, 32
      %v1010 = vpop.permute.xlu0 %1009
      %1011 = vrot.lane.b32.xlu0 %v934, 32
      %v1012 = vpop.permute.xlu0 %1011
      %1013 = vrot.lane.b32.xlu0 %v936, 32
      %v1014 = vpop.permute.xlu0 %1013
      %1015 = vrot.lane.b32.xlu0 %v939, 32
      %v1016 = vpop.permute.xlu0 %1015
      %1017 = vrot.lane.b32.xlu0 %v941, 32
      %v1018 = vpop.permute.xlu0 %1017
      %1019 = vrot.lane.b32.xlu0 %v944, 32
      %v1020 = vpop.permute.xlu0 %1019
      %1021 = vrot.lane.b32.xlu0 %v946, 32
      %v1022 = vpop.permute.xlu0 %1021
      %1023 = vrot.lane.b32.xlu0 %v949, 32
      %v1024 = vpop.permute.xlu0 %1023
      %1025 = vrot.lane.b32.xlu0 %v951, 32
      %v1026 = vpop.permute.xlu0 %1025
      %1027 = vrot.lane.b32.xlu0 %v954, 32
      %v1028 = vpop.permute.xlu0 %1027
      %1029 = vrot.lane.b32.xlu0 %v956, 32
      %v1030 = vpop.permute.xlu0 %1029
      %1031 = vrot.lane.b32.xlu0 %v959, 32
      %v1032 = vpop.permute.xlu0 %1031
      %1033 = vrot.lane.b32.xlu0 %v961, 32
      %v1034 = vpop.permute.xlu0 %1033
      %1035 = vrot.lane.b32.xlu0 %v964, 32
      %v1036 = vpop.permute.xlu0 %1035
      %1037 = vrot.lane.b32.xlu0 %v966, 32
      %v1038 = vpop.permute.xlu0 %1037
      %vm1075 = vcmask 1045504
      %v1076 = vrot.slane %v768, 2
      %v1077 = vrot.slane %v769, 2
      %v1078 = vsel %vm1075, %v1076, %v1077
      %v1079 = vrot.slane %v770, 2
      %v1080 = vsel %vm1075, %v1077, %v1079
      %v1081 = vrot.slane %v771, 2
      %v1082 = vrot.slane %v772, 2
      %v1083 = vsel %vm1075, %v1081, %v1082
      %v1084 = vrot.slane %v773, 2
      %v1085 = vsel %vm1075, %v1082, %v1084
      %v1086 = vrot.slane %v774, 2
      %v1087 = vrot.slane %v775, 2
      %v1088 = vsel %vm1075, %v1086, %v1087
      %v1089 = vrot.slane %v776, 2
      %v1090 = vsel %vm1075, %v1087, %v1089
      %v1091 = vrot.slane %v777, 2
      %v1092 = vrot.slane %v778, 2
      %v1093 = vsel %vm1075, %v1091, %v1092
      %v1094 = vrot.slane %v779, 2
      %v1095 = vsel %vm1075, %v1092, %v1094
      %v1096 = vrot.slane %v780, 2
      %v1097 = vrot.slane %v781, 2
      %v1098 = vsel %vm1075, %v1096, %v1097
      %v1099 = vrot.slane %v782, 2
      %v1100 = vsel %vm1075, %v1097, %v1099
      %v1101 = vrot.slane %v783, 2
      %v1102 = vrot.slane %v784, 2
      %v1103 = vsel %vm1075, %v1101, %v1102
      %v1104 = vrot.slane %v785, 2
      %v1105 = vsel %vm1075, %v1102, %v1104
      %v1106 = vrot.slane %v786, 2
      %v1107 = vrot.slane %v787, 2
      %v1108 = vsel %vm1075, %v1106, %v1107
      %v1109 = vrot.slane %v788, 2
      %v1110 = vsel %vm1075, %v1107, %v1109
      %v1111 = vrot.slane %v789, 2
      %v1112 = vrot.slane %v790, 2
      %v1113 = vsel %vm1075, %v1111, %v1112
      %v1114 = vrot.slane %v791, 2
      %v1115 = vsel %vm1075, %v1112, %v1114
      %v1116 = vrot.slane %v792, 2
      %v1117 = vrot.slane %v793, 2
      %v1118 = vsel %vm1075, %v1116, %v1117
      %v1119 = vrot.slane %v794, 2
      %v1120 = vsel %vm1075, %v1117, %v1119
      %v1121 = vrot.slane %v795, 2
      %v1122 = vrot.slane %v796, 2
      %v1123 = vsel %vm1075, %v1121, %v1122
      %v1124 = vrot.slane %v797, 2
      %v1125 = vsel %vm1075, %v1122, %v1124
      %v1126 = vrot.slane %v798, 2
      %v1127 = vrot.slane %v799, 2
      %v1128 = vsel %vm1075, %v1126, %v1127
      %v1129 = vrot.slane %v800, 2
      %v1130 = vsel %vm1075, %v1127, %v1129
      %v1131 = vrot.slane %v801, 2
      %v1132 = vrot.slane %v802, 2
      %v1133 = vsel %vm1075, %v1131, %v1132
      %v1134 = vrot.slane %v803, 2
      %v1135 = vsel %vm1075, %v1132, %v1134
      %v1136 = vrot.slane %v804, 2
      %v1137 = vrot.slane %v805, 2
      %v1138 = vsel %vm1075, %v1136, %v1137
      %v1139 = vrot.slane %v806, 2
      %v1140 = vsel %vm1075, %v1137, %v1139
      %v1141 = vrot.slane %v807, 2
      %v1142 = vrot.slane %v808, 2
      %v1143 = vsel %vm1075, %v1141, %v1142
      %v1144 = vrot.slane %v809, 2
      %v1145 = vsel %vm1075, %v1142, %v1144
      %v1146 = vrot.slane %v810, 2
      %v1147 = vrot.slane %v811, 2
      %v1148 = vsel %vm1075, %v1146, %v1147
      %v1149 = vrot.slane %v812, 2
      %v1150 = vsel %vm1075, %v1147, %v1149
      %v1151 = vrot.slane %v813, 2
      %v1152 = vrot.slane %v814, 2
      %v1153 = vsel %vm1075, %v1151, %v1152
      %v1154 = vrot.slane %v815, 2
      %v1155 = vsel %vm1075, %v1152, %v1154
      %v1156 = vrot.slane %v816, 2
      %v1157 = vrot.slane %v817, 2
      %v1158 = vsel %vm1075, %v1156, %v1157
      %v1159 = vrot.slane %v818, 2
      %v1160 = vsel %vm1075, %v1157, %v1159
      %v1161 = vrot.slane %v819, 2
      %v1162 = vrot.slane %v820, 2
      %v1163 = vsel %vm1075, %v1161, %v1162
      %v1164 = vrot.slane %v821, 2
      %v1165 = vsel %vm1075, %v1162, %v1164
      %1166 = vrot.lane.b32.xlu0 %v1078, 64
      %v1167 = vpop.permute.xlu0 %1166
      %1168 = vrot.lane.b32.xlu0 %v1080, 64
      %v1169 = vpop.permute.xlu0 %1168
      %1170 = vrot.lane.b32.xlu0 %v1083, 64
      %v1171 = vpop.permute.xlu0 %1170
      %1172 = vrot.lane.b32.xlu0 %v1085, 64
      %v1173 = vpop.permute.xlu0 %1172
      %1174 = vrot.lane.b32.xlu0 %v1088, 64
      %v1175 = vpop.permute.xlu0 %1174
      %1176 = vrot.lane.b32.xlu0 %v1090, 64
      %v1177 = vpop.permute.xlu0 %1176
      %1178 = vrot.lane.b32.xlu0 %v1093, 64
      %v1179 = vpop.permute.xlu0 %1178
      %1180 = vrot.lane.b32.xlu0 %v1095, 64
      %v1181 = vpop.permute.xlu0 %1180
      %1182 = vrot.lane.b32.xlu0 %v1098, 64
      %v1183 = vpop.permute.xlu0 %1182
      %1184 = vrot.lane.b32.xlu0 %v1100, 64
      %v1185 = vpop.permute.xlu0 %1184
      %1186 = vrot.lane.b32.xlu0 %v1103, 64
      %v1187 = vpop.permute.xlu0 %1186
      %1188 = vrot.lane.b32.xlu0 %v1105, 64
      %v1189 = vpop.permute.xlu0 %1188
      %1190 = vrot.lane.b32.xlu0 %v1108, 64
      %v1191 = vpop.permute.xlu0 %1190
      %1192 = vrot.lane.b32.xlu0 %v1110, 64
      %v1193 = vpop.permute.xlu0 %1192
      %1194 = vrot.lane.b32.xlu0 %v1113, 64
      %v1195 = vpop.permute.xlu0 %1194
      %1196 = vrot.lane.b32.xlu0 %v1115, 64
      %v1197 = vpop.permute.xlu0 %1196
      %1198 = vrot.lane.b32.xlu0 %v1118, 64
      %v1199 = vpop.permute.xlu0 %1198
      %1200 = vrot.lane.b32.xlu0 %v1120, 64
      %v1201 = vpop.permute.xlu0 %1200
      %1202 = vrot.lane.b32.xlu0 %v1123, 64
      %v1203 = vpop.permute.xlu0 %1202
      %1204 = vrot.lane.b32.xlu0 %v1125, 64
      %v1205 = vpop.permute.xlu0 %1204
      %1206 = vrot.lane.b32.xlu0 %v1128, 64
      %v1207 = vpop.permute.xlu0 %1206
      %1208 = vrot.lane.b32.xlu0 %v1130, 64
      %v1209 = vpop.permute.xlu0 %1208
      %1210 = vrot.lane.b32.xlu0 %v1133, 64
      %v1211 = vpop.permute.xlu0 %1210
      %1212 = vrot.lane.b32.xlu0 %v1135, 64
      %v1213 = vpop.permute.xlu0 %1212
      %1214 = vrot.lane.b32.xlu0 %v1138, 64
      %v1215 = vpop.permute.xlu0 %1214
      %1216 = vrot.lane.b32.xlu0 %v1140, 64
      %v1217 = vpop.permute.xlu0 %1216
      %1218 = vrot.lane.b32.xlu0 %v1143, 64
      %v1219 = vpop.permute.xlu0 %1218
      %1220 = vrot.lane.b32.xlu0 %v1145, 64
      %v1221 = vpop.permute.xlu0 %1220
      %1222 = vrot.lane.b32.xlu0 %v1148, 64
      %v1223 = vpop.permute.xlu0 %1222
      %1224 = vrot.lane.b32.xlu0 %v1150, 64
      %v1225 = vpop.permute.xlu0 %1224
      %1226 = vrot.lane.b32.xlu0 %v1153, 64
      %v1227 = vpop.permute.xlu0 %1226
      %1228 = vrot.lane.b32.xlu0 %v1155, 64
      %v1229 = vpop.permute.xlu0 %1228
      %1230 = vrot.lane.b32.xlu0 %v1158, 64
      %v1231 = vpop.permute.xlu0 %1230
      %1232 = vrot.lane.b32.xlu0 %v1160, 64
      %v1233 = vpop.permute.xlu0 %1232
      %1234 = vrot.lane.b32.xlu0 %v1163, 64
      %v1235 = vpop.permute.xlu0 %1234
      %1236 = vrot.lane.b32.xlu0 %v1165, 64
      %v1237 = vpop.permute.xlu0 %1236
      %v1274 = vsel %vm679, %v768, %v968
      %v1275 = vsel %vm679, %v769, %v970
      %v1276 = vsel %vm679, %v771, %v972
      %v1277 = vsel %vm679, %v772, %v974
      %v1278 = vsel %vm679, %v774, %v976
      %v1279 = vsel %vm679, %v775, %v978
      %v1280 = vsel %vm679, %v777, %v980
      %v1281 = vsel %vm679, %v778, %v982
      %v1282 = vsel %vm679, %v780, %v984
      %v1283 = vsel %vm679, %v781, %v986
      %v1284 = vsel %vm679, %v783, %v988
      %v1285 = vsel %vm679, %v784, %v990
      %v1286 = vsel %vm679, %v786, %v992
      %v1287 = vsel %vm679, %v787, %v994
      %v1288 = vsel %vm679, %v789, %v996
      %v1289 = vsel %vm679, %v790, %v998
      %v1290 = vsel %vm679, %v792, %v1000
      %v1291 = vsel %vm679, %v793, %v1002
      %v1292 = vsel %vm679, %v795, %v1004
      %v1293 = vsel %vm679, %v796, %v1006
      %v1294 = vsel %vm679, %v798, %v1008
      %v1295 = vsel %vm679, %v799, %v1010
      %v1296 = vsel %vm679, %v801, %v1012
      %v1297 = vsel %vm679, %v802, %v1014
      %v1298 = vsel %vm679, %v804, %v1016
      %v1299 = vsel %vm679, %v805, %v1018
      %v1300 = vsel %vm679, %v807, %v1020
      %v1301 = vsel %vm679, %v808, %v1022
      %v1302 = vsel %vm679, %v810, %v1024
      %v1303 = vsel %vm679, %v811, %v1026
      %v1304 = vsel %vm679, %v813, %v1028
      %v1305 = vsel %vm679, %v814, %v1030
      %v1306 = vsel %vm679, %v816, %v1032
      %v1307 = vsel %vm679, %v817, %v1034
      %v1308 = vsel %vm679, %v819, %v1036
      %v1309 = vsel %vm679, %v820, %v1038
      %vm1310 = vcmask 523264
      %v1311 = vsel %vm1310, %v1274, %v1167
      %v1312 = vsel %vm1310, %v1275, %v1169
      %v1313 = vsel %vm1310, %v1276, %v1171
      %v1314 = vsel %vm1310, %v1277, %v1173
      %v1315 = vsel %vm1310, %v1278, %v1175
      %v1316 = vsel %vm1310, %v1279, %v1177
      %v1317 = vsel %vm1310, %v1280, %v1179
      %v1318 = vsel %vm1310, %v1281, %v1181
      %v1319 = vsel %vm1310, %v1282, %v1183
      %v1320 = vsel %vm1310, %v1283, %v1185
      %v1321 = vsel %vm1310, %v1284, %v1187
      %v1322 = vsel %vm1310, %v1285, %v1189
      %v1323 = vsel %vm1310, %v1286, %v1191
      %v1324 = vsel %vm1310, %v1287, %v1193
      %v1325 = vsel %vm1310, %v1288, %v1195
      %v1326 = vsel %vm1310, %v1289, %v1197
      %v1327 = vsel %vm1310, %v1290, %v1199
      %v1328 = vsel %vm1310, %v1291, %v1201
      %v1329 = vsel %vm1310, %v1292, %v1203
      %v1330 = vsel %vm1310, %v1293, %v1205
      %v1331 = vsel %vm1310, %v1294, %v1207
      %v1332 = vsel %vm1310, %v1295, %v1209
      %v1333 = vsel %vm1310, %v1296, %v1211
      %v1334 = vsel %vm1310, %v1297, %v1213
      %v1335 = vsel %vm1310, %v1298, %v1215
      %v1336 = vsel %vm1310, %v1299, %v1217
      %v1337 = vsel %vm1310, %v1300, %v1219
      %v1338 = vsel %vm1310, %v1301, %v1221
      %v1339 = vsel %vm1310, %v1302, %v1223
      %v1340 = vsel %vm1310, %v1303, %v1225
      %v1341 = vsel %vm1310, %v1304, %v1227
      %v1342 = vsel %vm1310, %v1305, %v1229
      %v1343 = vsel %vm1310, %v1306, %v1231
      %v1344 = vsel %vm1310, %v1307, %v1233
      %v1345 = vsel %vm1310, %v1308, %v1235
      %v1346 = vsel %vm1310, %v1309, %v1237
      %v1347 = vpack.c.bf16 %v1311, %v1311
      %v1348 = vpack.c.bf16 %v1312, %v1312
      %v1349 = vpack.c.bf16 %v1313, %v1313
      %v1350 = vpack.c.bf16 %v1314, %v1314
      %v1351 = vpack.c.bf16 %v1315, %v1315
      %v1352 = vpack.c.bf16 %v1316, %v1316
      %v1353 = vpack.c.bf16 %v1317, %v1317
      %v1354 = vpack.c.bf16 %v1318, %v1318
      %v1355 = vpack.c.bf16 %v1319, %v1319
      %v1356 = vpack.c.bf16 %v1320, %v1320
      %v1357 = vpack.c.bf16 %v1321, %v1321
      %v1358 = vpack.c.bf16 %v1322, %v1322
      %v1359 = vpack.c.bf16 %v1323, %v1323
      %v1360 = vpack.c.bf16 %v1324, %v1324
      %v1361 = vpack.c.bf16 %v1325, %v1325
      %v1362 = vpack.c.bf16 %v1326, %v1326
      %v1363 = vpack.c.bf16 %v1327, %v1327
      %v1364 = vpack.c.bf16 %v1328, %v1328
      %v1365 = vpack.c.bf16 %v1329, %v1329
      %v1366 = vpack.c.bf16 %v1330, %v1330
      %v1367 = vpack.c.bf16 %v1331, %v1331
      %v1368 = vpack.c.bf16 %v1332, %v1332
      %v1369 = vpack.c.bf16 %v1333, %v1333
      %v1370 = vpack.c.bf16 %v1334, %v1334
      %v1371 = vpack.c.bf16 %v1335, %v1335
      %v1372 = vpack.c.bf16 %v1336, %v1336
      %v1373 = vpack.c.bf16 %v1337, %v1337
      %v1374 = vpack.c.bf16 %v1338, %v1338
      %v1375 = vpack.c.bf16 %v1339, %v1339
      %v1376 = vpack.c.bf16 %v1340, %v1340
      %v1377 = vpack.c.bf16 %v1341, %v1341
      %v1378 = vpack.c.bf16 %v1342, %v1342
      %v1379 = vpack.c.bf16 %v1343, %v1343
      %v1380 = vpack.c.bf16 %v1344, %v1344
      %v1381 = vpack.c.bf16 %v1345, %v1345
      %v1382 = vpack.c.bf16 %v1346, %v1346
      %v1383 = vld [vmem:[%s6] sm:$0xf]
      %v1384 = vld [vmem:[%s6 + $0x4] sm:$0xf]
      %v1385 = vld [vmem:[%s6 + $0x8] sm:$0xf]
      %v1386 = vld [vmem:[%s6 + $0xc] sm:$0xf]
      %v1387 = vld [vmem:[%s6 + $0x10] sm:$0xf]
      %v1388 = vld [vmem:[%s6 + $0x14] sm:$0xf]
      %v1389 = vld [vmem:[%s6 + $0x18] sm:$0xf]
      %v1390 = vld [vmem:[%s6 + $0x1c] sm:$0xf]
      %v1391 = vld [vmem:[%s6 + $0x20] sm:$0xf]
      %v1392 = vld [vmem:[%s6 + $0x24] sm:$0xf]
      %v1393 = vld [vmem:[%s6 + $0x28] sm:$0xf]
      %v1394 = vld [vmem:[%s6 + $0x2c] sm:$0xf]
      %v1395 = vld [vmem:[%s6 + $0x30] sm:$0xf]
      %v1396 = vld [vmem:[%s6 + $0x34] sm:$0xf]
      %v1397 = vld [vmem:[%s6 + $0x38] sm:$0xf]
      %v1398 = vld [vmem:[%s6 + $0x3c] sm:$0xf]
      %v1399 = vld [vmem:[%s6 + $0x40] sm:$0xf]
      %v1400 = vld [vmem:[%s6 + $0x44] sm:$0xf]
      %v1401 = vld [vmem:[%s6 + $0x48] sm:$0xf]
      %v1402 = vld [vmem:[%s6 + $0x4c] sm:$0xf]
      %v1403 = vld [vmem:[%s6 + $0x50] sm:$0xf]
      %v1404 = vld [vmem:[%s6 + $0x54] sm:$0xf]
      %v1405 = vld [vmem:[%s6 + $0x58] sm:$0xf]
      %v1406 = vld [vmem:[%s6 + $0x5c] sm:$0xf]
      %v1407 = vld [vmem:[%s6 + $0x60] sm:$0xf]
      %v1408 = vld [vmem:[%s6 + $0x64] sm:$0xf]
      %v1409 = vld [vmem:[%s6 + $0x68] sm:$0xf]
      %v1410 = vld [vmem:[%s6 + $0x6c] sm:$0xf]
      %v1411 = vld [vmem:[%s6 + $0x70] sm:$0xf]
      %v1412 = vld [vmem:[%s6 + $0x74] sm:$0xf]
      %v1413 = vld [vmem:[%s6 + $0x78] sm:$0xf]
      %v1414 = vld [vmem:[%s6 + $0x7c] sm:$0xf]
      %v1415 = vld [vmem:[%s6 + $0x80] sm:$0xf]
      %v1416 = vld [vmem:[%s6 + $0x84] sm:$0xf]
      %v1417 = vld [vmem:[%s6 + $0x88] sm:$0xf]
      %v1418 = vld [vmem:[%s6 + $0x8c] sm:$0xf]
      %v1451 = vunpack.c.l.b16 %v1349
      %v1452 = vunpack.c.l.b16 %v1350
      %v1453 = vunpack.c.l.b16 %v1351
      %v1454 = vunpack.c.l.b16 %v1352
      %v1455 = vunpack.c.l.b16 %v1353
      %v1456 = vunpack.c.l.b16 %v1354
      %v1457 = vunpack.c.l.b16 %v1355
      %v1458 = vunpack.c.l.b16 %v1356
      %v1459 = vunpack.c.l.b16 %v1357
      %v1460 = vunpack.c.l.b16 %v1358
      %v1461 = vunpack.c.l.b16 %v1359
      %v1462 = vunpack.c.l.b16 %v1360
      %v1463 = vunpack.c.l.b16 %v1361
      %v1464 = vunpack.c.l.b16 %v1362
      %v1465 = vunpack.c.l.b16 %v1363
      %v1466 = vunpack.c.l.b16 %v1364
      %v1467 = vunpack.c.l.b16 %v1365
      %v1468 = vunpack.c.l.b16 %v1366
      %v1469 = vunpack.c.l.b16 %v1367
      %v1470 = vunpack.c.l.b16 %v1368
      %v1471 = vunpack.c.l.b16 %v1369
      %v1472 = vunpack.c.l.b16 %v1370
      %v1473 = vunpack.c.l.b16 %v1371
      %v1474 = vunpack.c.l.b16 %v1372
      %v1475 = vunpack.c.l.b16 %v1373
      %v1476 = vunpack.c.l.b16 %v1374
      %v1477 = vunpack.c.l.b16 %v1375
      %v1478 = vunpack.c.l.b16 %v1376
      %v1479 = vunpack.c.l.b16 %v1377
      %v1480 = vunpack.c.l.b16 %v1378
      %v1481 = vunpack.c.l.b16 %v1379
      %v1482 = vunpack.c.l.b16 %v1380
      %v1483 = vpack.c.b16 %v1452, %v1451
      %v1484 = vpack.c.b16 %v1454, %v1453
      %v1485 = vpack.c.b16 %v1456, %v1455
      %v1486 = vpack.c.b16 %v1458, %v1457
      %v1487 = vpack.c.b16 %v1460, %v1459
      %v1488 = vpack.c.b16 %v1462, %v1461
      %v1489 = vpack.c.b16 %v1464, %v1463
      %v1490 = vpack.c.b16 %v1466, %v1465
      %v1491 = vpack.c.b16 %v1468, %v1467
      %v1492 = vpack.c.b16 %v1470, %v1469
      %v1493 = vpack.c.b16 %v1472, %v1471
      %v1494 = vpack.c.b16 %v1474, %v1473
      %v1495 = vpack.c.b16 %v1476, %v1475
      %v1496 = vpack.c.b16 %v1478, %v1477
      %v1497 = vpack.c.b16 %v1480, %v1479
      %v1498 = vpack.c.b16 %v1482, %v1481
      %v1511 = vunpack.c.l.b16 %v1395
      %v1512 = vunpack.c.l.b16 %v1396
      %v1513 = vunpack.c.l.b16 %v1397
      %v1514 = vunpack.c.l.b16 %v1398
      %v1515 = vunpack.c.l.b16 %v1399
      %v1516 = vunpack.c.l.b16 %v1400
      %v1517 = vunpack.c.l.b16 %v1401
      %v1518 = vunpack.c.l.b16 %v1402
      %v1519 = vunpack.c.l.b16 %v1403
      %v1520 = vunpack.c.l.b16 %v1404
      %v1521 = vunpack.c.l.b16 %v1405
      %v1522 = vunpack.c.l.b16 %v1406
      %v1523 = vpack.c.b16 %v1512, %v1511
      %v1524 = vpack.c.b16 %v1514, %v1513
      %v1525 = vpack.c.b16 %v1516, %v1515
      %v1526 = vpack.c.b16 %v1518, %v1517
      %v1527 = vpack.c.b16 %v1520, %v1519
      %v1528 = vpack.c.b16 %v1522, %v1521
      %vm1535 = vcmask 785408
      %v1537 = vsel %vm1535, %v1483, 0
      %v1540 = vsel %vm1535, %v1484, 0
      %v1543 = vsel %vm1535, %v1485, 0
      %v1546 = vsel %vm1535, %v1486, 0
      %v1549 = vsel %vm1535, %v1487, 0
      %v1552 = vsel %vm1535, %v1488, 0
      %v1555 = vsel %vm1535, %v1489, 0
      %v1558 = vsel %vm1535, %v1490, 0
      %v1561 = vsel %vm1535, %v1491, 0
      %v1564 = vsel %vm1535, %v1492, 0
      %v1567 = vsel %vm1535, %v1493, 0
      %v1570 = vsel %vm1535, %v1494, 0
      %v1573 = vsel %vm1535, %v1495, 0
      %v1576 = vsel %vm1535, %v1496, 0
      %v1579 = vsel %vm1535, %v1497, 0
      %v1582 = vsel %vm1535, %v1498, 0
      %1584 = vmatpush.bf16.msra.mxu0 0
      %1585 = vmatpush.bf16.msra.mxu0 0
      %1586 = vmatpush.bf16.msra.mxu0 %v1528
      %1587 = vmatpush.bf16.msra.mxu0 %v1527
      %1588 = vmatpush.bf16.msra.mxu0 %v1526
      %1589 = vmatpush.bf16.msra.mxu0 %v1525
      %1590 = vmatpush.bf16.msra.mxu0 %v1524
      %1591 = vmatpush.bf16.msra.mxu0 %v1523
      %1592 = vmatmul.bf16.gmra.mxu0 %v1537
      %v1593 = vpop.f32.mrf.mxu0
      %v1594 = vadd.f32 0.0, %v1593
      %v1595 = vpop.f32.mrf.mxu0
      %v1596 = vadd.f32 0.0, %v1595
      %1597 = vmatmul.bf16.gmra.mxu0 %v1540
      %v1598 = vpop.f32.mrf.mxu0
      %v1599 = vadd.f32 0.0, %v1598
      %v1600 = vpop.f32.mrf.mxu0
      %v1601 = vadd.f32 0.0, %v1600
      %1602 = vmatmul.bf16.gmra.mxu0 %v1543
      %v1603 = vpop.f32.mrf.mxu0
      %v1604 = vadd.f32 0.0, %v1603
      %v1605 = vpop.f32.mrf.mxu0
      %v1606 = vadd.f32 0.0, %v1605
      %1607 = vmatmul.bf16.gmra.mxu0 %v1546
      %v1608 = vpop.f32.mrf.mxu0
      %v1609 = vadd.f32 0.0, %v1608
      %v1610 = vpop.f32.mrf.mxu0
      %v1611 = vadd.f32 0.0, %v1610
      %1612 = vmatmul.bf16.gmra.mxu0 %v1549
      %v1613 = vpop.f32.mrf.mxu0
      %v1614 = vadd.f32 0.0, %v1613
      %v1615 = vpop.f32.mrf.mxu0
      %v1616 = vadd.f32 0.0, %v1615
      %1617 = vmatmul.bf16.gmra.mxu0 %v1552
      %v1618 = vpop.f32.mrf.mxu0
      %v1619 = vadd.f32 0.0, %v1618
      %v1620 = vpop.f32.mrf.mxu0
      %v1621 = vadd.f32 0.0, %v1620
      %1622 = vmatmul.bf16.gmra.mxu0 %v1555
      %v1623 = vpop.f32.mrf.mxu0
      %v1624 = vadd.f32 0.0, %v1623
      %v1625 = vpop.f32.mrf.mxu0
      %v1626 = vadd.f32 0.0, %v1625
      %1627 = vmatmul.bf16.gmra.mxu0 %v1558
      %v1628 = vpop.f32.mrf.mxu0
      %v1629 = vadd.f32 0.0, %v1628
      %v1630 = vpop.f32.mrf.mxu0
      %v1631 = vadd.f32 0.0, %v1630
      %1632 = vmatmul.bf16.gmra.mxu0 %v1561
      %v1633 = vpop.f32.mrf.mxu0
      %v1634 = vadd.f32 0.0, %v1633
      %v1635 = vpop.f32.mrf.mxu0
      %v1636 = vadd.f32 0.0, %v1635
      %1637 = vmatmul.bf16.gmra.mxu0 %v1564
      %v1638 = vpop.f32.mrf.mxu0
      %v1639 = vadd.f32 0.0, %v1638
      %v1640 = vpop.f32.mrf.mxu0
      %v1641 = vadd.f32 0.0, %v1640
      %1642 = vmatmul.bf16.gmra.mxu0 %v1567
      %v1643 = vpop.f32.mrf.mxu0
      %v1644 = vadd.f32 0.0, %v1643
      %v1645 = vpop.f32.mrf.mxu0
      %v1646 = vadd.f32 0.0, %v1645
      %1647 = vmatmul.bf16.gmra.mxu0 %v1570
      %v1648 = vpop.f32.mrf.mxu0
      %v1649 = vadd.f32 0.0, %v1648
      %v1650 = vpop.f32.mrf.mxu0
      %v1651 = vadd.f32 0.0, %v1650
      %1652 = vmatmul.bf16.gmra.mxu0 %v1573
      %v1653 = vpop.f32.mrf.mxu0
      %v1654 = vadd.f32 0.0, %v1653
      %v1655 = vpop.f32.mrf.mxu0
      %v1656 = vadd.f32 0.0, %v1655
      %1657 = vmatmul.bf16.gmra.mxu0 %v1576
      %v1658 = vpop.f32.mrf.mxu0
      %v1659 = vadd.f32 0.0, %v1658
      %v1660 = vpop.f32.mrf.mxu0
      %v1661 = vadd.f32 0.0, %v1660
      %1662 = vmatmul.bf16.gmra.mxu0 %v1579
      %v1663 = vpop.f32.mrf.mxu0
      %v1664 = vadd.f32 0.0, %v1663
      %v1665 = vpop.f32.mrf.mxu0
      %v1666 = vadd.f32 0.0, %v1665
      %1667 = vmatmul.bf16.gmra.mxu0 %v1582
      %v1668 = vpop.f32.mrf.mxu0
      %v1669 = vadd.f32 0.0, %v1668
      %v1670 = vpop.f32.mrf.mxu0
      %v1671 = vadd.f32 0.0, %v1670
      %1672 = vdwg.mxu0
      %v1675 = vunpack.c.l.b16 %v1347
      %v1676 = vunpack.c.l.b16 %v1348
      %v1677 = vpack.c.b16 %v1676, %v1675
      %v1690 = vunpack.c.l.b16 %v1383
      %v1691 = vunpack.c.l.b16 %v1384
      %v1692 = vunpack.c.l.b16 %v1385
      %v1693 = vunpack.c.l.b16 %v1386
      %v1694 = vunpack.c.l.b16 %v1387
      %v1695 = vunpack.c.l.b16 %v1388
      %v1696 = vunpack.c.l.b16 %v1389
      %v1697 = vunpack.c.l.b16 %v1390
      %v1698 = vunpack.c.l.b16 %v1391
      %v1699 = vunpack.c.l.b16 %v1392
      %v1700 = vunpack.c.l.b16 %v1393
      %v1701 = vunpack.c.l.b16 %v1394
      %v1702 = vpack.c.b16 %v1691, %v1690
      %v1703 = vpack.c.b16 %v1693, %v1692
      %v1704 = vpack.c.b16 %v1695, %v1694
      %v1705 = vpack.c.b16 %v1697, %v1696
      %v1706 = vpack.c.b16 %v1699, %v1698
      %v1707 = vpack.c.b16 %v1701, %v1700
      %v1715 = vsel %vm1535, %v1677, 0
      %1717 = vmatpush.bf16.msra.mxu0 0
      %1718 = vmatpush.bf16.msra.mxu0 0
      %1719 = vmatpush.bf16.msra.mxu0 %v1707
      %1720 = vmatpush.bf16.msra.mxu0 %v1706
      %1721 = vmatpush.bf16.msra.mxu0 %v1705
      %1722 = vmatpush.bf16.msra.mxu0 %v1704
      %1723 = vmatpush.bf16.msra.mxu0 %v1703
      %1724 = vmatpush.bf16.msra.mxu0 %v1702
      %1725 = vmatmul.bf16.gmra.mxu0 %v1715
      %v1726 = vpop.f32.mrf.mxu0
      %v1727 = vadd.f32 %v1594, %v1726
      %v1728 = vpop.f32.mrf.mxu0
      %v1729 = vadd.f32 %v1596, %v1728
      %1730 = vmatmul.bf16.gmra.mxu0 %v1537
      %v1731 = vpop.f32.mrf.mxu0
      %v1732 = vadd.f32 %v1599, %v1731
      %v1733 = vpop.f32.mrf.mxu0
      %v1734 = vadd.f32 %v1601, %v1733
      %1735 = vmatmul.bf16.gmra.mxu0 %v1540
      %v1736 = vpop.f32.mrf.mxu0
      %v1737 = vadd.f32 %v1604, %v1736
      %v1738 = vpop.f32.mrf.mxu0
      %v1739 = vadd.f32 %v1606, %v1738
      %1740 = vmatmul.bf16.gmra.mxu0 %v1543
      %v1741 = vpop.f32.mrf.mxu0
      %v1742 = vadd.f32 %v1609, %v1741
      %v1743 = vpop.f32.mrf.mxu0
      %v1744 = vadd.f32 %v1611, %v1743
      %1745 = vmatmul.bf16.gmra.mxu0 %v1546
      %v1746 = vpop.f32.mrf.mxu0
      %v1747 = vadd.f32 %v1614, %v1746
      %v1748 = vpop.f32.mrf.mxu0
      %v1749 = vadd.f32 %v1616, %v1748
      %1750 = vmatmul.bf16.gmra.mxu0 %v1549
      %v1751 = vpop.f32.mrf.mxu0
      %v1752 = vadd.f32 %v1619, %v1751
      %v1753 = vpop.f32.mrf.mxu0
      %v1754 = vadd.f32 %v1621, %v1753
      %1755 = vmatmul.bf16.gmra.mxu0 %v1552
      %v1756 = vpop.f32.mrf.mxu0
      %v1757 = vadd.f32 %v1624, %v1756
      %v1758 = vpop.f32.mrf.mxu0
      %v1759 = vadd.f32 %v1626, %v1758
      %1760 = vmatmul.bf16.gmra.mxu0 %v1555
      %v1761 = vpop.f32.mrf.mxu0
      %v1762 = vadd.f32 %v1629, %v1761
      %v1763 = vpop.f32.mrf.mxu0
      %v1764 = vadd.f32 %v1631, %v1763
      %1765 = vmatmul.bf16.gmra.mxu0 %v1558
      %v1766 = vpop.f32.mrf.mxu0
      %v1767 = vadd.f32 %v1634, %v1766
      %v1768 = vpop.f32.mrf.mxu0
      %v1769 = vadd.f32 %v1636, %v1768
      %1770 = vmatmul.bf16.gmra.mxu0 %v1561
      %v1771 = vpop.f32.mrf.mxu0
      %v1772 = vadd.f32 %v1639, %v1771
      %v1773 = vpop.f32.mrf.mxu0
      %v1774 = vadd.f32 %v1641, %v1773
      %1775 = vmatmul.bf16.gmra.mxu0 %v1564
      %v1776 = vpop.f32.mrf.mxu0
      %v1777 = vadd.f32 %v1644, %v1776
      %v1778 = vpop.f32.mrf.mxu0
      %v1779 = vadd.f32 %v1646, %v1778
      %1780 = vmatmul.bf16.gmra.mxu0 %v1567
      %v1781 = vpop.f32.mrf.mxu0
      %v1782 = vadd.f32 %v1649, %v1781
      %v1783 = vpop.f32.mrf.mxu0
      %v1784 = vadd.f32 %v1651, %v1783
      %1785 = vmatmul.bf16.gmra.mxu0 %v1570
      %v1786 = vpop.f32.mrf.mxu0
      %v1787 = vadd.f32 %v1654, %v1786
      %v1788 = vpop.f32.mrf.mxu0
      %v1789 = vadd.f32 %v1656, %v1788
      %1790 = vmatmul.bf16.gmra.mxu0 %v1573
      %v1791 = vpop.f32.mrf.mxu0
      %v1792 = vadd.f32 %v1659, %v1791
      %v1793 = vpop.f32.mrf.mxu0
      %v1794 = vadd.f32 %v1661, %v1793
      %1795 = vmatmul.bf16.gmra.mxu0 %v1576
      %v1796 = vpop.f32.mrf.mxu0
      %v1797 = vadd.f32 %v1664, %v1796
      %v1798 = vpop.f32.mrf.mxu0
      %v1799 = vadd.f32 %v1666, %v1798
      %1800 = vmatmul.bf16.gmra.mxu0 %v1579
      %v1801 = vpop.f32.mrf.mxu0
      %v1802 = vadd.f32 %v1669, %v1801
      %v1803 = vpop.f32.mrf.mxu0
      %v1804 = vadd.f32 %v1671, %v1803
      %1805 = vdwg.mxu0
      %v1808 = vunpack.c.l.b16 %v1381
      %v1809 = vunpack.c.l.b16 %v1382
      %v1810 = vpack.c.b16 %v1809, %v1808
      %v1823 = vunpack.c.l.b16 %v1407
      %v1824 = vunpack.c.l.b16 %v1408
      %v1825 = vunpack.c.l.b16 %v1409
      %v1826 = vunpack.c.l.b16 %v1410
      %v1827 = vunpack.c.l.b16 %v1411
      %v1828 = vunpack.c.l.b16 %v1412
      %v1829 = vunpack.c.l.b16 %v1413
      %v1830 = vunpack.c.l.b16 %v1414
      %v1831 = vunpack.c.l.b16 %v1415
      %v1832 = vunpack.c.l.b16 %v1416
      %v1833 = vunpack.c.l.b16 %v1417
      %v1834 = vunpack.c.l.b16 %v1418
      %v1835 = vpack.c.b16 %v1824, %v1823
      %v1836 = vpack.c.b16 %v1826, %v1825
      %v1837 = vpack.c.b16 %v1828, %v1827
      %v1838 = vpack.c.b16 %v1830, %v1829
      %v1839 = vpack.c.b16 %v1832, %v1831
      %v1840 = vpack.c.b16 %v1834, %v1833
      %v1848 = vsel %vm1535, %v1810, 0
      %1850 = vmatpush.bf16.msra.mxu0 0
      %1851 = vmatpush.bf16.msra.mxu0 0
      %1852 = vmatpush.bf16.msra.mxu0 %v1840
      %1853 = vmatpush.bf16.msra.mxu0 %v1839
      %1854 = vmatpush.bf16.msra.mxu0 %v1838
      %1855 = vmatpush.bf16.msra.mxu0 %v1837
      %1856 = vmatpush.bf16.msra.mxu0 %v1836
      %1857 = vmatpush.bf16.msra.mxu0 %v1835
      %1858 = vmatmul.bf16.gmra.mxu0 %v1540
      %v1859 = vpop.f32.mrf.mxu0
      %v1860 = vadd.f32 0.0, %v1859
      %v1861 = vpop.f32.mrf.mxu0
      %v1862 = vadd.f32 0.0, %v1861
      %1863 = vmatmul.bf16.gmra.mxu0 %v1543
      %v1864 = vpop.f32.mrf.mxu0
      %v1865 = vadd.f32 0.0, %v1864
      %v1866 = vpop.f32.mrf.mxu0
      %v1867 = vadd.f32 0.0, %v1866
      %1868 = vmatmul.bf16.gmra.mxu0 %v1546
      %v1869 = vpop.f32.mrf.mxu0
      %v1870 = vadd.f32 0.0, %v1869
      %v1871 = vpop.f32.mrf.mxu0
      %v1872 = vadd.f32 0.0, %v1871
      %1873 = vmatmul.bf16.gmra.mxu0 %v1549
      %v1874 = vpop.f32.mrf.mxu0
      %v1875 = vadd.f32 0.0, %v1874
      %v1876 = vpop.f32.mrf.mxu0
      %v1877 = vadd.f32 0.0, %v1876
      %1878 = vmatmul.bf16.gmra.mxu0 %v1552
      %v1879 = vpop.f32.mrf.mxu0
      %v1880 = vadd.f32 0.0, %v1879
      %v1881 = vpop.f32.mrf.mxu0
      %v1882 = vadd.f32 0.0, %v1881
      %1883 = vmatmul.bf16.gmra.mxu0 %v1555
      %v1884 = vpop.f32.mrf.mxu0
      %v1885 = vadd.f32 0.0, %v1884
      %v1886 = vpop.f32.mrf.mxu0
      %v1887 = vadd.f32 0.0, %v1886
      %1888 = vmatmul.bf16.gmra.mxu0 %v1558
      %v1889 = vpop.f32.mrf.mxu0
      %v1890 = vadd.f32 0.0, %v1889
      %v1891 = vpop.f32.mrf.mxu0
      %v1892 = vadd.f32 0.0, %v1891
      %1893 = vmatmul.bf16.gmra.mxu0 %v1561
      %v1894 = vpop.f32.mrf.mxu0
      %v1895 = vadd.f32 0.0, %v1894
      %v1896 = vpop.f32.mrf.mxu0
      %v1897 = vadd.f32 0.0, %v1896
      %1898 = vmatmul.bf16.gmra.mxu0 %v1564
      %v1899 = vpop.f32.mrf.mxu0
      %v1900 = vadd.f32 0.0, %v1899
      %v1901 = vpop.f32.mrf.mxu0
      %v1902 = vadd.f32 0.0, %v1901
      %1903 = vmatmul.bf16.gmra.mxu0 %v1567
      %v1904 = vpop.f32.mrf.mxu0
      %v1905 = vadd.f32 0.0, %v1904
      %v1906 = vpop.f32.mrf.mxu0
      %v1907 = vadd.f32 0.0, %v1906
      %1908 = vmatmul.bf16.gmra.mxu0 %v1570
      %v1909 = vpop.f32.mrf.mxu0
      %v1910 = vadd.f32 0.0, %v1909
      %v1911 = vpop.f32.mrf.mxu0
      %v1912 = vadd.f32 0.0, %v1911
      %1913 = vmatmul.bf16.gmra.mxu0 %v1573
      %v1914 = vpop.f32.mrf.mxu0
      %v1915 = vadd.f32 0.0, %v1914
      %v1916 = vpop.f32.mrf.mxu0
      %v1917 = vadd.f32 0.0, %v1916
      %1918 = vmatmul.bf16.gmra.mxu0 %v1576
      %v1919 = vpop.f32.mrf.mxu0
      %v1920 = vadd.f32 0.0, %v1919
      %v1921 = vpop.f32.mrf.mxu0
      %v1922 = vadd.f32 0.0, %v1921
      %1923 = vmatmul.bf16.gmra.mxu0 %v1579
      %v1924 = vpop.f32.mrf.mxu0
      %v1925 = vadd.f32 0.0, %v1924
      %v1926 = vpop.f32.mrf.mxu0
      %v1927 = vadd.f32 0.0, %v1926
      %1928 = vmatmul.bf16.gmra.mxu0 %v1582
      %v1929 = vpop.f32.mrf.mxu0
      %v1930 = vadd.f32 0.0, %v1929
      %v1931 = vpop.f32.mrf.mxu0
      %v1932 = vadd.f32 0.0, %v1931
      %1933 = vmatmul.bf16.gmra.mxu0 %v1848
      %v1934 = vpop.f32.mrf.mxu0
      %v1935 = vadd.f32 0.0, %v1934
      %v1936 = vpop.f32.mrf.mxu0
      %v1937 = vadd.f32 0.0, %v1936
      %1938 = vdwg.mxu0
      %v1939 = vadd.f32 %v1727, %v1860
      %v1940 = vadd.f32 %v1729, %v1862
      %v1941 = vadd.f32 %v1732, %v1865
      %v1942 = vadd.f32 %v1734, %v1867
      %v1943 = vadd.f32 %v1737, %v1870
      %v1944 = vadd.f32 %v1739, %v1872
      %v1945 = vadd.f32 %v1742, %v1875
      %v1946 = vadd.f32 %v1744, %v1877
      %v1947 = vadd.f32 %v1747, %v1880
      %v1948 = vadd.f32 %v1749, %v1882
      %v1949 = vadd.f32 %v1752, %v1885
      %v1950 = vadd.f32 %v1754, %v1887
      %v1951 = vadd.f32 %v1757, %v1890
      %v1952 = vadd.f32 %v1759, %v1892
      %v1953 = vadd.f32 %v1762, %v1895
      %v1954 = vadd.f32 %v1764, %v1897
      %v1955 = vadd.f32 %v1767, %v1900
      %v1956 = vadd.f32 %v1769, %v1902
      %v1957 = vadd.f32 %v1772, %v1905
      %v1958 = vadd.f32 %v1774, %v1907
      %v1959 = vadd.f32 %v1777, %v1910
      %v1960 = vadd.f32 %v1779, %v1912
      %v1961 = vadd.f32 %v1782, %v1915
      %v1962 = vadd.f32 %v1784, %v1917
      %v1963 = vadd.f32 %v1787, %v1920
      %v1964 = vadd.f32 %v1789, %v1922
      %v1965 = vadd.f32 %v1792, %v1925
      %v1966 = vadd.f32 %v1794, %v1927
      %v1967 = vadd.f32 %v1797, %v1930
      %v1968 = vadd.f32 %v1799, %v1932
      %v1969 = vadd.f32 %v1802, %v1935
      %v1970 = vadd.f32 %v1804, %v1937
      %1971 = vst.msk [vmem:[%s278] sm:$0xff] %vm433, %v1939
      %1972 = vst.msk [vmem:[%s278 + $0x8] sm:$0xff] %vm433, %v1940
      %1973 = vst.msk [vmem:[%s278 + $0x10] sm:$0xff] %vm433, %v1941
      %1974 = vst.msk [vmem:[%s278 + $0x18] sm:$0xff] %vm433, %v1942
      %1975 = vst.msk [vmem:[%s278 + $0x20] sm:$0xff] %vm433, %v1943
      %1976 = vst.msk [vmem:[%s278 + $0x28] sm:$0xff] %vm433, %v1944
      %1977 = vst.msk [vmem:[%s278 + $0x30] sm:$0xff] %vm433, %v1945
      %1978 = vst.msk [vmem:[%s278 + $0x38] sm:$0xff] %vm433, %v1946
      %1979 = vst.msk [vmem:[%s278 + $0x40] sm:$0xff] %vm433, %v1947
      %1980 = vst.msk [vmem:[%s278 + $0x48] sm:$0xff] %vm433, %v1948
      %1981 = vst.msk [vmem:[%s278 + $0x50] sm:$0xff] %vm433, %v1949
      %1982 = vst.msk [vmem:[%s278 + $0x58] sm:$0xff] %vm433, %v1950
      %1983 = vst.msk [vmem:[%s278 + $0x60] sm:$0xff] %vm433, %v1951
      %1984 = vst.msk [vmem:[%s278 + $0x68] sm:$0xff] %vm433, %v1952
      %1985 = vst.msk [vmem:[%s278 + $0x70] sm:$0xff] %vm433, %v1953
      %1986 = vst.msk [vmem:[%s278 + $0x78] sm:$0xff] %vm433, %v1954
      %1987 = vst.msk [vmem:[%s278 + $0x80] sm:$0xff] %vm433, %v1955
      %1988 = vst.msk [vmem:[%s278 + $0x88] sm:$0xff] %vm433, %v1956
      %1989 = vst.msk [vmem:[%s278 + $0x90] sm:$0xff] %vm433, %v1957
      %1990 = vst.msk [vmem:[%s278 + $0x98] sm:$0xff] %vm433, %v1958
      %1991 = vst.msk [vmem:[%s278 + $0xa0] sm:$0xff] %vm433, %v1959
      %1992 = vst.msk [vmem:[%s278 + $0xa8] sm:$0xff] %vm433, %v1960
      %1993 = vst.msk [vmem:[%s278 + $0xb0] sm:$0xff] %vm433, %v1961
      %1994 = vst.msk [vmem:[%s278 + $0xb8] sm:$0xff] %vm433, %v1962
      %1995 = vst.msk [vmem:[%s278 + $0xc0] sm:$0xff] %vm433, %v1963
      %1996 = vst.msk [vmem:[%s278 + $0xc8] sm:$0xff] %vm433, %v1964
      %1997 = vst.msk [vmem:[%s278 + $0xd0] sm:$0xff] %vm433, %v1965
      %1998 = vst.msk [vmem:[%s278 + $0xd8] sm:$0xff] %vm433, %v1966
      %1999 = vst.msk [vmem:[%s278 + $0xe0] sm:$0xff] %vm433, %v1967
      %2000 = vst.msk [vmem:[%s278 + $0xe8] sm:$0xff] %vm433, %v1968
      %2001 = vst.msk [vmem:[%s278 + $0xf0] sm:$0xff] %vm433, %v1969
      %2002 = vst.msk [vmem:[%s278 + $0xf8] sm:$0xff] %vm433, %v1970
      %p2003 = scmp.lt.s32.totalorder %s18, 1
      %s2004 = scalar_select %p2003, %s18, 1
      %s2005 = smul.addr %s2004, 32
      %s2006 = smul.addr %s2005, 8
      %s2007 = scalar_lea.vmem %s7, %s2006
      // Predicated region
      $region49: #{dense_layer_forward.1} parent=47 // pred_check
        %p2008 = pneg %p188
      $region50: #{dense_layer_forward.1} parent=47 // pred_check_branch
        %2010 = sbr.rel (%p2008) target = $region52
      $region51: #{dense_layer_forward.1} parent=47 // pred_region
        _
      $region52: #{dense_layer_forward.1} parent=47 // pred_fallthru
        _
    $region48: #{dense_layer_forward.1} parent=5 // pred_fallthru
      _
    %p2011 = scmp.le.s32.totalorder 2, %s13
    // Predicated region
    $region53: #{dense_layer_forward.1} parent=5 // pred_check
      %p2012 = pneg %p2011
    $region54: #{dense_layer_forward.1} parent=5 // pred_check_branch
      %2014 = sbr.rel (%p2012) target = $region56
    $region55: #{dense_layer_forward.1} parent=5 // pred_region
      %s2015 = ssub.s32 %s13, 2
      // Predicated region
      $region57: #{dense_layer_forward.1} parent=55 // pred_check
        %p2016 = pneg %p194
      $region58: #{dense_layer_forward.1} parent=55 // pred_check_branch
        %2018 = sbr.rel (%p2016) target = $region60
      $region59: #{dense_layer_forward.1} parent=55 // pred_region
        %p2019 = scmp.lt.s32.totalorder %s19, 1
        %s2020 = scalar_select %p2019, %s19, 1
        %s2021 = smul.addr %s2020, 32
        %s2022 = smul.addr %s2021, 8
        %s2023 = scalar_lea.vmem %s7, %s2022
      $region60: #{dense_layer_forward.1} parent=55 // pred_fallthru
        _
    $region56: #{dense_layer_forward.1} parent=5 // pred_fallthru
      _
  $region6: #{dense_layer_forward.1} parent=0 // loop_footer
    %s17 = sadd.s32 1, %s13
  $region7: #{dense_layer_forward.1} parent=0 // loop_footer_branch
    %12 = sbr.rel target = $region3
  $region8: #{dense_layer_forward.1} parent=0 // loop_exit
    _

</llo_original>
